<compile_context>
chip_gen: v7x
topology: tpu7x:2x2x1
jax: 0.10.0
libtpu: 0.0.40
codegen_flags: <defaults>
</compile_context>

<pallas_src>
import functools
import numpy as np
import jax
import jax.numpy as jnp
from jax import lax
from jax.experimental import pallas as pl
from jax.experimental.pallas import tpu as pltpu

_INV_LN10 = float(1.0 / np.log(10.0))
_F32_INF_BITS = 0x7F800000   # +inf bit pattern; upper bound for non-negative f32 values
_N_BISECT_STEPS = 31         # [0, 0x7F800000] needs exactly 31 halvings to converge


# ----------------------------------------------------------------------------
# Pass 1: per-row-tile forward (projection, embedding, fused heads, rcn MLP)
# ----------------------------------------------------------------------------
def _fwd_tile_kernel(x_ref, prx_ref, wh_ref, b1_ref, w2_ref, b2_ref,
                     slab_ref, zlog_ref, *, logscale, n_cat, n_gsub):
    # Projection on the MXU; accumulate in f32 regardless of input dtype.
    prj = jnp.dot(x_ref[...], prx_ref[...], preferred_element_type=jnp.float32)
    zlog = jnp.log(prj) * _INV_LN10                      # log10(prj)
    zlog_ref[...] = zlog                                 # intermediate for bit_cnst pass

    emb = jnp.tanh((zlog - logscale) * (1.0 / logscale))

    # Fused heads: [dcd.weight | rcn.W1] pushed through the MXU once.
    heads = jnp.dot(emb, wh_ref[...], preferred_element_type=jnp.float32)
    fine = heads[:, :n_cat]
    h = jnp.maximum(heads[:, n_cat:] + b1_ref[...], 0.0)
    xrcn = jnp.maximum(
        jnp.dot(h, w2_ref[...], preferred_element_type=jnp.float32) + b2_ref[...],
        0.0)

    # Direct column-slice stores into the output slab (no concatenate temp).
    slab_ref[:, 0:n_cat] = fine
    slab_ref[:, n_cat:n_cat + n_gsub] = xrcn
    slab_ref[:, n_cat + n_gsub:] = emb


# ----------------------------------------------------------------------------
# Pass 2a: bit_cnst with zlog^T fully resident in VMEM (single invocation)
# ----------------------------------------------------------------------------
def _bitcnst_resident_kernel(zlog_t_ref, bc_ref, *,
                             lo_p, hi_p, logmin, logmax, n_steps):
    n_bit = zlog_t_ref.shape[0]
    z = zlog_t_ref[...]                                   # (n_bit, N), lane-dense

    # Monotone transforms: lo_p smallest zlog give the lo_p smallest y_a,
    # hi_p largest zlog give the hi_p smallest y_b.  Both are >= 0, so the f32
    # bit pattern viewed as int32 is order-isomorphic to the value.
    bits_a = pltpu.bitcast(jnp.maximum(z - logmin, 0.0), jnp.int32)
    bits_b = pltpu.bitcast(jnp.maximum(logmax - z, 0.0), jnp.int32)

    zero = jnp.zeros((n_bit, 1), jnp.int32)
    inf = jnp.full((n_bit, 1), _F32_INF_BITS, jnp.int32)

    def body(_, carry):
        la, ha, lb, hb = carry
        mid_a = la + ((ha - la) >> 1)
        mid_b = lb + ((hb - lb) >> 1)
        cnt_a = jnp.sum((bits_a <= mid_a).astype(jnp.int32), axis=1, keepdims=True)
        cnt_b = jnp.sum((bits_b <= mid_b).astype(jnp.int32), axis=1, keepdims=True)
        keep_a = cnt_a >= lo_p
        keep_b = cnt_b >= hi_p
        return (jnp.where(keep_a, la, mid_a + 1), jnp.where(keep_a, mid_a, ha),
                jnp.where(keep_b, lb, mid_b + 1), jnp.where(keep_b, mid_b, hb))

    la, _, lb, _ = lax.fori_loop(0, n_steps, body, (zero, inf, zero, inf))

    # la/lb hold the exact bit pattern of the k-th smallest value per column.
    thr_a = pltpu.bitcast(la, jnp.float32)
    thr_b = pltpu.bitcast(lb, jnp.float32)
    y_a = jnp.maximum(z - logmin, 0.0)
    y_b = jnp.maximum(logmax - z, 0.0)
    lt_a = y_a < thr_a
    lt_b = y_b < thr_b
    cnt_a = jnp.sum(lt_a.astype(jnp.int32), axis=1, keepdims=True)
    cnt_b = jnp.sum(lt_b.astype(jnp.int32), axis=1, keepdims=True)
    sum_a = jnp.sum(jnp.where(lt_a, y_a, 0.0), axis=1, keepdims=True)
    sum_b = jnp.sum(jnp.where(lt_b, y_b, 0.0), axis=1, keepdims=True)
    # sum of the k smallest of y = sum_{y < thr} y + (k - #{y < thr}) * thr
    tot_a = sum_a + (lo_p - cnt_a).astype(jnp.float32) * thr_a
    tot_b = sum_b + (hi_p - cnt_b).astype(jnp.float32) * thr_b
    lo = jnp.sum(tot_a, axis=0, keepdims=True) * (1.0 / (lo_p * n_bit))
    hi = jnp.sum(tot_b, axis=0, keepdims=True) * (1.0 / (hi_p * n_bit))
    bc_ref[...] = lo + hi


# ----------------------------------------------------------------------------
# Pass 2b: streamed bit_cnst (bisection over large lane-dense zlog^T tiles)
# ----------------------------------------------------------------------------
def _bitcnst_stream_kernel(zlog_t_ref, bc_ref,
                           la, ha, lb, hb, cnt_a, cnt_b, sum_a, sum_b,
                           *, lo_p, hi_p, logmin, logmax, n_cells, tile_cols,
                           n_steps):
    step = pl.program_id(0)          # bisection step (last step == finalize pass)
    tile = pl.program_id(1)          # column tile of zlog^T (cells along lanes)
    n_tiles = pl.num_programs(1)
    n_bit = zlog_t_ref.shape[0]

    z = zlog_t_ref[...]                                   # (n_bit, tile_cols)
    y_a = jnp.maximum(z - logmin, 0.0)
    y_b = jnp.maximum(logmax - z, 0.0)
    bits_a = pltpu.bitcast(y_a, jnp.int32)
    bits_b = pltpu.bitcast(y_b, jnp.int32)

    # Mask cells beyond N (partial last tile reads unspecified padding).
    col = tile * tile_cols + lax.broadcasted_iota(jnp.int32, (n_bit, tile_cols), 1)
    valid = col < n_cells

    @pl.when(jnp.logical_and(step == 0, tile == 0))
    def _init_bounds():
        la[...] = jnp.zeros_like(la)
        ha[...] = jnp.full_like(ha, _F32_INF_BITS)
        lb[...] = jnp.zeros_like(lb)
        hb[...] = jnp.full_like(hb, _F32_INF_BITS)

    @pl.when(tile == 0)
    def _reset_accumulators():
        cnt_a[...] = jnp.zeros_like(cnt_a)
        cnt_b[...] = jnp.zeros_like(cnt_b)
        sum_a[...] = jnp.zeros_like(sum_a)
        sum_b[...] = jnp.zeros_like(sum_b)

    in_bisect = step < n_steps

    @pl.when(in_bisect)
    def _bisect():
        # All tiles of a step see the same bounds -> same per-column midpoint.
        mid_a = la[...] + ((ha[...] - la[...]) >> 1)
        mid_b = lb[...] + ((hb[...] - lb[...]) >> 1)
        sel_a = jnp.logical_and(valid, bits_a <= mid_a)
        sel_b = jnp.logical_and(valid, bits_b <= mid_b)
        cnt_a[...] += jnp.sum(sel_a.astype(jnp.int32), axis=1, keepdims=True)
        cnt_b[...] += jnp.sum(sel_b.astype(jnp.int32), axis=1, keepdims=True)

        @pl.when(tile == n_tiles - 1)
        def _update_bounds():
            keep_a = cnt_a[...] >= lo_p
            keep_b = cnt_b[...] >= hi_p
            ha[...] = jnp.where(keep_a, mid_a, ha[...])
            la[...] = jnp.where(keep_a, la[...], mid_a + 1)
            hb[...] = jnp.where(keep_b, mid_b, hb[...])
            lb[...] = jnp.where(keep_b, lb[...], mid_b + 1)

    @pl.when(jnp.logical_not(in_bisect))
    def _finalize_pass():
        thr_a = pltpu.bitcast(la[...], jnp.float32)
        thr_b = pltpu.bitcast(lb[...], jnp.float32)
        lt_a = jnp.logical_and(valid, y_a < thr_a)
        lt_b = jnp.logical_and(valid, y_b < thr_b)
        cnt_a[...] += jnp.sum(lt_a.astype(jnp.int32), axis=1, keepdims=True)
        cnt_b[...] += jnp.sum(lt_b.astype(jnp.int32), axis=1, keepdims=True)
        sum_a[...] += jnp.sum(jnp.where(lt_a, y_a, 0.0), axis=1, keepdims=True)
        sum_b[...] += jnp.sum(jnp.where(lt_b, y_b, 0.0), axis=1, keepdims=True)

        @pl.when(tile == n_tiles - 1)
        def _write_out():
            tot_a = sum_a[...] + (lo_p - cnt_a[...]).astype(jnp.float32) * thr_a
            tot_b = sum_b[...] + (hi_p - cnt_b[...]).astype(jnp.float32) * thr_b
            lo = jnp.sum(tot_a, axis=0, keepdims=True) * (1.0 / (lo_p * n_bit))
            hi = jnp.sum(tot_b, axis=0, keepdims=True) * (1.0 / (hi_p * n_bit))
            bc_ref[...] = lo + hi


# ----------------------------------------------------------------------------
# Tile / budget selection
# ----------------------------------------------------------------------------
def _vmem_capacity_bytes():
    try:
        info = pltpu.get_tpu_info()
        cap = getattr(info, "vmem_capacity_bytes", None)
        if cap:
            return int(cap)
    except Exception:
        pass
    return 64 * 1024 * 1024          # conservative (v7x per-TensorCore)


def _generation_budgets():
    """(tile_budget_bytes, vmem_limit_bytes) sized per TPU generation."""
    cap = _vmem_capacity_bytes()
    if cap >= 100 * 1024 * 1024:     # v5e / v6e: 128 MiB physical VMEM
        return 56 * 1024 * 1024, 96 * 1024 * 1024
    return 20 * 1024 * 1024, 44 * 1024 * 1024   # v7x (64 MiB/TC) or unknown


def _round_down(x, m):
    return max(m, (x // m) * m)


def _pick_row_tile(n_rows, bytes_per_row, budget):
    t = int(budget // max(bytes_per_row, 1))
    t = max(8, min(t, 32768, n_rows))
    if t < n_rows:
        t = _round_down(t, 8)
    return t


def _pick_col_tile(n_cells, n_bit, budget):
    per_col = 2 * n_bit * 4          # double-buffered zlog^T columns
    t = int(budget // max(per_col, 1))
    t = max(128, min(t, 262144, n_cells))
    if t < n_cells:
        t = _round_down(t, 128)
    return t


# ----------------------------------------------------------------------------
# Wrapper
# ----------------------------------------------------------------------------
def celltype_net_forward(X, params, *, mxpr, scale, min_sgnl, max_sgnl,
                         row_tile=None, bc_col_tile=None,
                         projection_dtype=jnp.float32,
                         bitcnst_mode="auto",
                         vmem_limit_bytes=None):
    """Pallas forward of CellTypeNet (noise=None, drprt=0, n_rcn_layers=2)."""
    N, n_gns = X.shape
    n_bit = params["enc_w"].shape[1]
    n_cat = params["dcd_w"].shape[1]
    n_mid = params["rcn_w1"].shape[1]
    n_gsub = params["rcn_w2"].shape[1]
    n_slab = n_cat + n_gsub + n_bit

    lo_p = N // 4
    hi_p = N // 10
    if lo_p == 0 or hi_p == 0:
        raise ValueError("bit_cnst needs N >= 10 cells (N//4 and N//10 must be > 0).")

    logscale = float(np.log10(scale))
    logmin = float(np.log10(min_sgnl))
    logmax = float(np.log10(max_sgnl))

    tile_budget, auto_vmem_limit = _generation_budgets()
    if vmem_limit_bytes is None:
        vmem_limit_bytes = auto_vmem_limit

    # Hoisted encoder transform (identical for every row tile).
    wts = jnp.exp(params["enc_w"].astype(jnp.float32))
    prx = wts * (float(mxpr) / jnp.sum(wts))                       # (n_gns, n_bit)

    # Fused head RHS: [dcd.weight | rcn.W1].
    w_heads = jnp.concatenate([params["dcd_w"].astype(jnp.float32),
                               params["rcn_w1"].astype(jnp.float32)], axis=1)

    # bfloat16 halves the dominant HBM stream on v6e/v7x; f32 kept as the
    # default because log10 amplifies relative error (validate before flipping).
    x_mm = X.astype(projection_dtype)
    prx_mm = prx.astype(projection_dtype)
    x_bytes = jnp.dtype(projection_dtype).itemsize

    # ---- pass 1: per-row-tile forward ----
    weight_bytes = (n_gns * n_bit * x_bytes + n_bit * (n_cat + n_mid) * 4
                    + n_mid * 4 + n_mid * n_gsub * 4 + n_gsub * 4)
    per_row_bytes = 2 * (n_gns * x_bytes + (n_slab + n_bit) * 4)   # dbl-buffered in+out
    if row_tile is None:
        row_tile = _pick_row_tile(
            N, per_row_bytes, max(tile_budget - 2 * weight_bytes, 1 << 20))
    row_tile = min(int(row_tile), N)
    if row_tile < N:
        row_tile = _round_down(row_tile, 8)
    n_row_tiles = pl.cdiv(N, row_tile)

    slab, zlog = pl.pallas_call(
        functools.partial(_fwd_tile_kernel, logscale=logscale,
                          n_cat=n_cat, n_gsub=n_gsub),
        grid=(n_row_tiles,),
        in_specs=[
            pl.BlockSpec((row_tile, n_gns), lambda i: (i, 0)),
            pl.BlockSpec((n_gns, n_bit), lambda i: (0, 0)),
            pl.BlockSpec((n_bit, n_cat + n_mid), lambda i: (0, 0)),
            pl.BlockSpec((1, n_mid), lambda i: (0, 0)),
            pl.BlockSpec((n_mid, n_gsub), lambda i: (0, 0)),
            pl.BlockSpec((1, n_gsub), lambda i: (0, 0)),
        ],
        out_specs=(
            pl.BlockSpec((row_tile, n_slab), lambda i: (i, 0)),
            pl.BlockSpec((row_tile, n_bit), lambda i: (i, 0)),
        ),
        out_shape=(
            jax.ShapeDtypeStruct((N, n_slab), jnp.float32),
            jax.ShapeDtypeStruct((N, n_bit), jnp.float32),
        ),
        compiler_params=pltpu.CompilerParams(
            dimension_semantics=("parallel",),
            vmem_limit_bytes=vmem_limit_bytes),
    )(x_mm, prx_mm, w_heads,
      params["rcn_b1"].astype(jnp.float32),
      params["rcn_w2"].astype(jnp.float32),
      params["rcn_b2"].astype(jnp.float32))

    # ---- pass 2: bit_cnst from lane-dense transposed zlog (n_bit, N) ----
    zlog_t = jnp.transpose(zlog)

    if bitcnst_mode == "auto":
        resident = 6 * n_bit * N * 4 + (2 << 20) <= tile_budget
    elif bitcnst_mode == "resident":
        resident = True
    elif bitcnst_mode == "streamed":
        resident = False
    else:
        raise ValueError(f"bad bitcnst_mode: {bitcnst_mode!r}")

    if resident:
        bc = pl.pallas_call(
            functools.partial(_bitcnst_resident_kernel, lo_p=lo_p, hi_p=hi_p,
                              logmin=logmin, logmax=logmax,
                              n_steps=_N_BISECT_STEPS),
            grid=(1,),
            in_specs=[pl.BlockSpec((n_bit, N), lambda s: (0, 0))],
            out_specs=pl.BlockSpec((1, 1), lambda s: (0, 0)),
            out_shape=jax.ShapeDtypeStruct((1, 1), jnp.float32),
            compiler_params=pltpu.CompilerParams(
                dimension_semantics=("arbitrary",),
                vmem_limit_bytes=vmem_limit_bytes),
        )(zlog_t)
    else:
        if bc_col_tile is None:
            bc_col_tile = _pick_col_tile(N, n_bit, tile_budget)
        bc_col_tile = min(int(bc_col_tile), N)
        if bc_col_tile < N:
            bc_col_tile = _round_down(bc_col_tile, 128)
        n_col_tiles = pl.cdiv(N, bc_col_tile)
        bc = pl.pallas_call(
            functools.partial(_bitcnst_stream_kernel, lo_p=lo_p, hi_p=hi_p,
                              logmin=logmin, logmax=logmax, n_cells=N,
                              tile_cols=bc_col_tile, n_steps=_N_BISECT_STEPS),
            grid=(_N_BISECT_STEPS + 1, n_col_tiles),
            in_specs=[pl.BlockSpec((n_bit, bc_col_tile), lambda s, t: (0, t))],
            out_specs=pl.BlockSpec((1, 1), lambda s, t: (0, 0)),
            out_shape=jax.ShapeDtypeStruct((1, 1), jnp.float32),
            scratch_shapes=[pltpu.VMEM((n_bit, 1), jnp.int32)] * 6
                         + [pltpu.VMEM((n_bit, 1), jnp.float32)] * 2,
            compiler_params=pltpu.CompilerParams(
                dimension_semantics=("arbitrary", "arbitrary"),
                vmem_limit_bytes=vmem_limit_bytes),
        )(zlog_t)

    fine = slab[:, :n_cat]
    xrcn = slab[:, n_cat:n_cat + n_gsub]
    emb = slab[:, n_cat + n_gsub:]
    return fine, xrcn, emb, bc[0, 0]


# ----------------------------------------------------------------------------
# Pure-JAX reference of the PyTorch forward (noise=None, drprt=0)
# ----------------------------------------------------------------------------
def reference_forward(X, params, *, mxpr, scale, min_sgnl, max_sgnl):
    N = X.shape[0]
    logscale = np.log10(scale)
    logmin = np.log10(min_sgnl)
    logmax = np.log10(max_sgnl)
    hp = lax.Precision.HIGHEST
    wts = jnp.exp(params["enc_w"])
    prx = wts / jnp.sum(wts) * mxpr
    prj = jnp.dot(X, prx, precision=hp)
    zlog = jnp.log10(prj)
    o = jnp.sort(zlog, axis=0)
    hi_p = N // 10
    lo_p = N // 4
    lo = jnp.mean(jnp.maximum(o[:lo_p, :] - logmin, 0.0))
    hi = jnp.mean(jnp.maximum(logmax - o[-hi_p:, :], 0.0))
    bit_cnst = lo + hi
    emb = jnp.tanh((zlog - logscale) / logscale)
    fine = jnp.dot(emb, params["dcd_w"], precision=hp)
    h = jnp.maximum(jnp.dot(emb, params["rcn_w1"], precision=hp) + params["rcn_b1"], 0.0)
    xrcn = jnp.maximum(jnp.dot(h, params["rcn_w2"], precision=hp) + params["rcn_b2"], 0.0)
    return fine, xrcn, emb, bit_cnst


if __name__ == "__main__":
    # Small shapes consistent with the module (n_rcn_layers == 2 sizing).
    N, n_gns, n_bit, n_cat, n_gsub = 640, 32, 14, 10, 12
    n_mid = max(n_gsub // 2, n_bit)                      # == 14
    mxpr, scale, min_sgnl, max_sgnl = 90000.0, 10000.0, 100.0, 50000.0

    key = jax.random.PRNGKey(0)
    k = jax.random.split(key, 8)
    params = {
        "enc_w": jax.random.normal(k[0], (n_gns, n_bit), jnp.float32),
        "dcd_w": jax.random.normal(k[1], (n_bit, n_cat), jnp.float32),
        "rcn_w1": jax.random.uniform(k[2], (n_bit, n_mid), jnp.float32, -0.25, 0.25),
        "rcn_b1": jax.random.uniform(k[3], (1, n_mid), jnp.float32, -0.25, 0.25),
        "rcn_w2": jax.random.uniform(k[4], (n_mid, n_gsub), jnp.float32, -0.25, 0.25),
        "rcn_b2": jax.random.uniform(k[5], (1, n_gsub), jnp.float32, -0.25, 0.25),
    }
    # Gene count matrix (strictly positive projections -> finite log10).
    X = jax.random.uniform(k[6], (N, n_gns), jnp.float32, 0.0, 10.0)

    r_fine, r_xrcn, r_emb, r_bc = reference_forward(
        X, params, mxpr=mxpr, scale=scale, min_sgnl=min_sgnl, max_sgnl=max_sgnl)

    def check(outs):
        fine, xrcn, emb, bit_cnst = outs
        np.testing.assert_allclose(np.asarray(fine), np.asarray(r_fine), rtol=2e-3, atol=2e-3)
        np.testing.assert_allclose(np.asarray(xrcn), np.asarray(r_xrcn), rtol=2e-3, atol=2e-3)
        np.testing.assert_allclose(np.asarray(emb), np.asarray(r_emb), rtol=2e-3, atol=2e-3)
        np.testing.assert_allclose(np.asarray(bit_cnst), np.asarray(r_bc), rtol=2e-3, atol=2e-3)

    # Run 1: multi-tile pass 1 (row_tile=128 -> 5 tiles) + VMEM-resident bit_cnst.
    outs1 = celltype_net_forward(
        X, params, mxpr=mxpr, scale=scale, min_sgnl=min_sgnl, max_sgnl=max_sgnl,
        row_tile=128, bitcnst_mode="auto")
    jax.block_until_ready(outs1)
    check(outs1)

    # Run 2: auto row tile + streamed bit_cnst with a partial last column tile
    # (exercises the multi-tile bisection and the OOB-cell masking path).
    outs2 = celltype_net_forward(
        X, params, mxpr=mxpr, scale=scale, min_sgnl=min_sgnl, max_sgnl=max_sgnl,
        bitcnst_mode="streamed", bc_col_tile=256)
    jax.block_until_ready(outs2)
    check(outs2)

    print("KERNEL_OK")
</pallas_src>

<mosaic_0001>
module attributes {stable_mosaic.version = 11 : i64} {
  func.func @_fwd_tile_kernel(%arg0: i32, %arg1: memref<128x32xf32, #tpu.memory_space<vmem>>, %arg2: memref<32x14xf32, #tpu.memory_space<vmem>>, %arg3: memref<14x24xf32, #tpu.memory_space<vmem>>, %arg4: memref<1x14xf32, #tpu.memory_space<vmem>>, %arg5: memref<14x12xf32, #tpu.memory_space<vmem>>, %arg6: memref<1x12xf32, #tpu.memory_space<vmem>>, %arg7: memref<128x36xf32, #tpu.memory_space<vmem>>, %arg8: memref<128x14xf32, #tpu.memory_space<vmem>>) attributes {dimension_semantics = [#tpu.dimension_semantics<parallel>], iteration_bounds = array<i64: 5>, scalar_prefetch = 0 : i64, scratch_operands = 0 : i64, tpu.core_type = #tpu.core_type<tc>, window_params = [{transform_indices = @transform_0, window_bounds = array<i64: 128, 32>}, {pipeline_mode = #tpu.pipeline_mode<synchronous>, transform_indices = @transform_1, window_bounds = array<i64: 32, 14>}, {pipeline_mode = #tpu.pipeline_mode<synchronous>, transform_indices = @transform_2, window_bounds = array<i64: 14, 24>}, {pipeline_mode = #tpu.pipeline_mode<synchronous>, transform_indices = @transform_3, window_bounds = array<i64: 1, 14>}, {pipeline_mode = #tpu.pipeline_mode<synchronous>, transform_indices = @transform_4, window_bounds = array<i64: 14, 12>}, {pipeline_mode = #tpu.pipeline_mode<synchronous>, transform_indices = @transform_5, window_bounds = array<i64: 1, 12>}, {transform_indices = @transform_6, window_bounds = array<i64: 128, 36>}, {transform_indices = @transform_7, window_bounds = array<i64: 128, 14>}]} {
    %c0 = arith.constant 0 : index
    %c0_0 = arith.constant 0 : index
    %0 = vector.load %arg1[%c0, %c0_0] : memref<128x32xf32, #tpu.memory_space<vmem>>, vector<128x32xf32>
    %c0_1 = arith.constant 0 : index
    %c0_2 = arith.constant 0 : index
    %1 = vector.load %arg2[%c0_1, %c0_2] : memref<32x14xf32, #tpu.memory_space<vmem>>, vector<32x14xf32>
    %cst = arith.constant dense<0.000000e+00> : vector<128x14xf32>
    %2 = tpu.matmul %0, %1, %cst {dimension_numbers = #tpu.dot_dimension_numbers<[1], [0], [0], [1], [0, 0, 1, 1], [], []>} : vector<128x32xf32>, vector<32x14xf32>, vector<128x14xf32> -> vector<128x14xf32>
    %3 = math.log %2 : vector<128x14xf32>
    %cst_3 = arith.constant 0.434294492 : f32
    %4 = vector.broadcast %cst_3 : f32 to vector<128x14xf32>
    %5 = arith.mulf %3, %4 : vector<128x14xf32>
    %c0_4 = arith.constant 0 : index
    %c0_5 = arith.constant 0 : index
    %6 = vector.load %arg8[%c0_4, %c0_5] : memref<128x14xf32, #tpu.memory_space<vmem>>, vector<128x14xf32>
    tpu.vector_store %arg8[%c0_4, %c0_5], %5 {strides = array<i32>} : memref<128x14xf32, #tpu.memory_space<vmem>>, vector<128x14xf32>,
    %cst_6 = arith.constant 4.000000e+00 : f32
    %7 = vector.broadcast %cst_6 : f32 to vector<128x14xf32>
    %8 = arith.subf %5, %7 : vector<128x14xf32>
    %cst_7 = arith.constant 2.500000e-01 : f32
    %9 = vector.broadcast %cst_7 : f32 to vector<128x14xf32>
    %10 = arith.mulf %8, %9 : vector<128x14xf32>
    %11 = math.tanh %10 : vector<128x14xf32>
    %c0_8 = arith.constant 0 : index
    %c0_9 = arith.constant 0 : index
    %12 = vector.load %arg3[%c0_8, %c0_9] : memref<14x24xf32, #tpu.memory_space<vmem>>, vector<14x24xf32>
    %cst_10 = arith.constant dense<0.000000e+00> : vector<128x24xf32>
    %13 = tpu.matmul %11, %12, %cst_10 {dimension_numbers = #tpu.dot_dimension_numbers<[1], [0], [0], [1], [0, 0, 1, 1], [], []>} : vector<128x14xf32>, vector<14x24xf32>, vector<128x24xf32> -> vector<128x24xf32>
    %14 = vector.extract_strided_slice %13 {offsets = [0, 0], sizes = [128, 10], strides = [1, 1]} : vector<128x24xf32> to vector<128x10xf32>
    %15 = vector.extract_strided_slice %13 {offsets = [0, 10], sizes = [128, 14], strides = [1, 1]} : vector<128x24xf32> to vector<128x14xf32>
    %c0_11 = arith.constant 0 : index
    %c0_12 = arith.constant 0 : index
    %16 = vector.load %arg4[%c0_11, %c0_12] : memref<1x14xf32, #tpu.memory_space<vmem>>, vector<1x14xf32>
    %17 = vector.broadcast %16 : vector<1x14xf32> to vector<128x14xf32>
    %18 = arith.addf %15, %17 : vector<128x14xf32>
    %cst_13 = arith.constant 0.000000e+00 : f32
    %19 = vector.broadcast %cst_13 : f32 to vector<128x14xf32>
    %20 = arith.maximumf %18, %19 : vector<128x14xf32>
    %c0_14 = arith.constant 0 : index
    %c0_15 = arith.constant 0 : index
    %21 = vector.load %arg5[%c0_14, %c0_15] : memref<14x12xf32, #tpu.memory_space<vmem>>, vector<14x12xf32>
    %cst_16 = arith.constant dense<0.000000e+00> : vector<128x12xf32>
    %22 = tpu.matmul %20, %21, %cst_16 {dimension_numbers = #tpu.dot_dimension_numbers<[1], [0], [0], [1], [0, 0, 1, 1], [], []>} : vector<128x14xf32>, vector<14x12xf32>, vector<128x12xf32> -> vector<128x12xf32>
    %c0_17 = arith.constant 0 : index
    %c0_18 = arith.constant 0 : index
    %23 = vector.load %arg6[%c0_17, %c0_18] : memref<1x12xf32, #tpu.memory_space<vmem>>, vector<1x12xf32>
    %24 = vector.broadcast %23 : vector<1x12xf32> to vector<128x12xf32>
    %25 = arith.addf %22, %24 : vector<128x12xf32>
    %cst_19 = arith.constant 0.000000e+00 : f32
    %26 = vector.broadcast %cst_19 : f32 to vector<128x12xf32>
    %27 = arith.maximumf %25, %26 : vector<128x12xf32>
    %c0_20 = arith.constant 0 : index
    %c0_21 = arith.constant 0 : index
    %28 = vector.load %arg7[%c0_20, %c0_21] : memref<128x36xf32, #tpu.memory_space<vmem>>, vector<128x10xf32>
    tpu.vector_store %arg7[%c0_20, %c0_21], %14 {strides = array<i32>} : memref<128x36xf32, #tpu.memory_space<vmem>>, vector<128x10xf32>,
    %c0_22 = arith.constant 0 : index
    %c10 = arith.constant 10 : index
    %29 = vector.load %arg7[%c0_22, %c10] : memref<128x36xf32, #tpu.memory_space<vmem>>, vector<128x12xf32>
    tpu.vector_store %arg7[%c0_22, %c10], %27 {strides = array<i32>} : memref<128x36xf32, #tpu.memory_space<vmem>>, vector<128x12xf32>,
    %c0_23 = arith.constant 0 : index
    %c22 = arith.constant 22 : index
    %30 = vector.load %arg7[%c0_23, %c22] : memref<128x36xf32, #tpu.memory_space<vmem>>, vector<128x14xf32>
    tpu.vector_store %arg7[%c0_23, %c22], %11 {strides = array<i32>} : memref<128x36xf32, #tpu.memory_space<vmem>>, vector<128x14xf32>,
    return
  }
  func.func @transform_0(%arg0: i32) -> (i32, i32) {
    %c0_i32 = arith.constant 0 : i32
    %c0_i32_0 = arith.constant 0 : i32
    return %arg0, %c0_i32 : i32, i32
  }
  func.func @transform_1(%arg0: i32) -> (i32, i32) {
    %c0_i32 = arith.constant 0 : i32
    %c0_i32_0 = arith.constant 0 : i32
    %c0_i32_1 = arith.constant 0 : i32
    return %c0_i32, %c0_i32_0 : i32, i32
  }
  func.func @transform_2(%arg0: i32) -> (i32, i32) {
    %c0_i32 = arith.constant 0 : i32
    %c0_i32_0 = arith.constant 0 : i32
    %c0_i32_1 = arith.constant 0 : i32
    return %c0_i32, %c0_i32_0 : i32, i32
  }
  func.func @transform_3(%arg0: i32) -> (i32, i32) {
    %c0_i32 = arith.constant 0 : i32
    %c0_i32_0 = arith.constant 0 : i32
    %c0_i32_1 = arith.constant 0 : i32
    return %c0_i32, %c0_i32_0 : i32, i32
  }
  func.func @transform_4(%arg0: i32) -> (i32, i32) {
    %c0_i32 = arith.constant 0 : i32
    %c0_i32_0 = arith.constant 0 : i32
    %c0_i32_1 = arith.constant 0 : i32
    return %c0_i32, %c0_i32_0 : i32, i32
  }
  func.func @transform_5(%arg0: i32) -> (i32, i32) {
    %c0_i32 = arith.constant 0 : i32
    %c0_i32_0 = arith.constant 0 : i32
    %c0_i32_1 = arith.constant 0 : i32
    return %c0_i32, %c0_i32_0 : i32, i32
  }
  func.func @transform_6(%arg0: i32) -> (i32, i32) {
    %c0_i32 = arith.constant 0 : i32
    %c0_i32_0 = arith.constant 0 : i32
    return %arg0, %c0_i32 : i32, i32
  }
  func.func @transform_7(%arg0: i32) -> (i32, i32) {
    %c0_i32 = arith.constant 0 : i32
    %c0_i32_0 = arith.constant 0 : i32
    return %arg0, %c0_i32 : i32, i32
  }
}

</mosaic_0001>

<llo_original>
// kernel: tpu_custom_call.1
$region0: #{tpu_custom_call.1}
  #allocation0 [shape = 'u32[]', space=smem, size = 0x4, offset = 0x4, fixed_abs, tag = 'smem constant byte address 0x4 - core index']
  #allocation1 [shape = 'u32[144,128]{1,0:T(1,128)}', space=vmem, size = 0x12000, scoped, tag = 'internal scratch']
  %s0 = inlined_call_operand.vmem [shape: f32[640,32], index: 0, kind: input, shape index: {}]
  %s1 = inlined_call_operand.vmem [shape: f32[32,14], index: 1, kind: input, shape index: {}]
  %s2 = inlined_call_operand.vmem [shape: f32[14,24], index: 2, kind: input, shape index: {}]
  %s3 = inlined_call_operand.vmem [shape: f32[1,14], index: 3, kind: input, shape index: {}]
  %s4 = inlined_call_operand.vmem [shape: f32[14,12], index: 4, kind: input, shape index: {}]
  %s5 = inlined_call_operand.vmem [shape: f32[1,12], index: 5, kind: input, shape index: {}]
  %s6 = inlined_call_operand.vmem [shape: f32[640,36], index: 6, kind: output, shape index: {0}]
  %s7 = inlined_call_operand.vmem [shape: f32[640,14], index: 7, kind: output, shape index: {1}]
  %8 = xla_tuple %s6, %s7
  %s9 = sld [smem:[#allocation0]]
  $region65: #{tpu_custom_call.1} parent=0
    _
  %s11 = ssub.s32 1, %s9
  %s12 = scalar_select 0, %s11, %s9
  loop: start=0, step=1, limit=7
  $region2: #{tpu_custom_call.1} parent=0 // loop_pre_header
    _
  $region3: #{tpu_custom_call.1} parent=0 // loop_header
    %s14 = sphi 0, %s18
    %p15 = scmp.ge.s32.totalorder %s14, 7
    %s24 = sphi 0, %s26
    %s27 = sphi 0, %s24
    %s28 = sphi 0, %s27
    %s44 = sphi 0, %s28
    %s48 = sphi 0, %s48
    %s50 = sphi 0, %s48
    %s51 = sphi 0, %s50
    %s65 = sphi 0, %s51
    %s69 = sphi 0, %s69
    %s71 = sphi 0, %s69
    %s72 = sphi 0, %s71
    %s86 = sphi 0, %s72
    %s90 = sphi 0, %s90
    %s92 = sphi 0, %s90
    %s93 = sphi 0, %s92
    %s107 = sphi 0, %s93
    %s111 = sphi 0, %s111
    %s113 = sphi 0, %s111
    %s114 = sphi 0, %s113
    %s128 = sphi 0, %s114
    %s132 = sphi 0, %s132
    %s134 = sphi 0, %s132
    %s135 = sphi 0, %s134
    %s149 = sphi 0, %s135
    %s155 = sphi 0, %s157
    %s158 = sphi 0, %s155
    %s159 = sphi 0, %s158
    %s175 = sphi 0, %s159
    %s181 = sphi 0, %s183
    %s184 = sphi 0, %s181
    %s185 = sphi 0, %s184
    %s201 = sphi 0, %s185
  $region4: #{tpu_custom_call.1} parent=0 // loop_header_branch
    %17 = sbr.rel (%p15) target = $region8
  $region5: #{tpu_custom_call.1} parent=0 // loop_body
    %s19 = ssub.s32 %s14, 1
    %s20 = ssub.s32 %s14, 2
    %s21 = sadd.s32 %s14, 1
    %s22 = ssub.s32 %s14, %s21
    %p23 = scmp.eq.s32.totalorder %s22, 0
    %s25 = sadd.s32 %s24, 1
    %s26 = scalar_select %p23, %s24, %s25
    %p29 = pneg %p23
    %p30 = scmp.eq.s32.totalorder %s14, 4
    %p31 = por %p29, %p30
    %p32 = scmp.ne.s32.totalorder %s24, %s27
    %p33 = scmp.eq.s32.totalorder %s14, 0
    %p34 = por %p32, %p33
    %p35 = scmp.ne.s32.totalorder %s24, %s27
    %p36 = scmp.eq.s32.totalorder %s19, 4
    %p37 = por %p35, %p36
    %p38 = scmp.ne.s32.totalorder %s27, %s28
    %p39 = scmp.eq.s32.totalorder %s19, 0
    %p40 = por %p38, %p39
    %p41 = scmp.ne.s32.totalorder %s27, %s28
    %p42 = scmp.eq.s32.totalorder %s20, 4
    %p43 = por %p41, %p42
    %p45 = scmp.ne.s32.totalorder %s28, %s44
    %p46 = scmp.eq.s32.totalorder %s20, 0
    %p47 = por %p45, %p46
    %s49 = sadd.s32 %s48, 1
    %p52 = scmp.eq.s32.totalorder %s14, 4
    %p53 = scmp.ne.s32.totalorder %s48, %s50
    %p54 = scmp.eq.s32.totalorder %s14, 0
    %p55 = por %p53, %p54
    %p56 = scmp.ne.s32.totalorder %s48, %s50
    %p57 = scmp.eq.s32.totalorder %s19, 4
    %p58 = por %p56, %p57
    %p59 = scmp.ne.s32.totalorder %s50, %s51
    %p60 = scmp.eq.s32.totalorder %s19, 0
    %p61 = por %p59, %p60
    %p62 = scmp.ne.s32.totalorder %s50, %s51
    %p63 = scmp.eq.s32.totalorder %s20, 4
    %p64 = por %p62, %p63
    %p66 = scmp.ne.s32.totalorder %s51, %s65
    %p67 = scmp.eq.s32.totalorder %s20, 0
    %p68 = por %p66, %p67
    %s70 = sadd.s32 %s69, 1
    %p73 = scmp.eq.s32.totalorder %s14, 4
    %p74 = scmp.ne.s32.totalorder %s69, %s71
    %p75 = scmp.eq.s32.totalorder %s14, 0
    %p76 = por %p74, %p75
    %p77 = scmp.ne.s32.totalorder %s69, %s71
    %p78 = scmp.eq.s32.totalorder %s19, 4
    %p79 = por %p77, %p78
    %p80 = scmp.ne.s32.totalorder %s71, %s72
    %p81 = scmp.eq.s32.totalorder %s19, 0
    %p82 = por %p80, %p81
    %p83 = scmp.ne.s32.totalorder %s71, %s72
    %p84 = scmp.eq.s32.totalorder %s20, 4
    %p85 = por %p83, %p84
    %p87 = scmp.ne.s32.totalorder %s72, %s86
    %p88 = scmp.eq.s32.totalorder %s20, 0
    %p89 = por %p87, %p88
    %s91 = sadd.s32 %s90, 1
    %p94 = scmp.eq.s32.totalorder %s14, 4
    %p95 = scmp.ne.s32.totalorder %s90, %s92
    %p96 = scmp.eq.s32.totalorder %s14, 0
    %p97 = por %p95, %p96
    %p98 = scmp.ne.s32.totalorder %s90, %s92
    %p99 = scmp.eq.s32.totalorder %s19, 4
    %p100 = por %p98, %p99
    %p101 = scmp.ne.s32.totalorder %s92, %s93
    %p102 = scmp.eq.s32.totalorder %s19, 0
    %p103 = por %p101, %p102
    %p104 = scmp.ne.s32.totalorder %s92, %s93
    %p105 = scmp.eq.s32.totalorder %s20, 4
    %p106 = por %p104, %p105
    %p108 = scmp.ne.s32.totalorder %s93, %s107
    %p109 = scmp.eq.s32.totalorder %s20, 0
    %p110 = por %p108, %p109
    %s112 = sadd.s32 %s111, 1
    %p115 = scmp.eq.s32.totalorder %s14, 4
    %p116 = scmp.ne.s32.totalorder %s111, %s113
    %p117 = scmp.eq.s32.totalorder %s14, 0
    %p118 = por %p116, %p117
    %p119 = scmp.ne.s32.totalorder %s111, %s113
    %p120 = scmp.eq.s32.totalorder %s19, 4
    %p121 = por %p119, %p120
    %p122 = scmp.ne.s32.totalorder %s113, %s114
    %p123 = scmp.eq.s32.totalorder %s19, 0
    %p124 = por %p122, %p123
    %p125 = scmp.ne.s32.totalorder %s113, %s114
    %p126 = scmp.eq.s32.totalorder %s20, 4
    %p127 = por %p125, %p126
    %p129 = scmp.ne.s32.totalorder %s114, %s128
    %p130 = scmp.eq.s32.totalorder %s20, 0
    %p131 = por %p129, %p130
    %s133 = sadd.s32 %s132, 1
    %p136 = scmp.eq.s32.totalorder %s14, 4
    %p137 = scmp.ne.s32.totalorder %s132, %s134
    %p138 = scmp.eq.s32.totalorder %s14, 0
    %p139 = por %p137, %p138
    %p140 = scmp.ne.s32.totalorder %s132, %s134
    %p141 = scmp.eq.s32.totalorder %s19, 4
    %p142 = por %p140, %p141
    %p143 = scmp.ne.s32.totalorder %s134, %s135
    %p144 = scmp.eq.s32.totalorder %s19, 0
    %p145 = por %p143, %p144
    %p146 = scmp.ne.s32.totalorder %s134, %s135
    %p147 = scmp.eq.s32.totalorder %s20, 4
    %p148 = por %p146, %p147
    %p150 = scmp.ne.s32.totalorder %s135, %s149
    %p151 = scmp.eq.s32.totalorder %s20, 0
    %p152 = por %p150, %p151
    %s153 = ssub.s32 %s14, %s21
    %p154 = scmp.eq.s32.totalorder %s153, 0
    %s156 = sadd.s32 %s155, 1
    %s157 = scalar_select %p154, %s155, %s156
    %p160 = pneg %p154
    %p161 = scmp.eq.s32.totalorder %s14, 4
    %p162 = por %p160, %p161
    %p163 = scmp.ne.s32.totalorder %s155, %s158
    %p164 = scmp.eq.s32.totalorder %s14, 0
    %p165 = por %p163, %p164
    %p166 = scmp.ne.s32.totalorder %s155, %s158
    %p167 = scmp.eq.s32.totalorder %s19, 4
    %p168 = por %p166, %p167
    %p169 = scmp.ne.s32.totalorder %s158, %s159
    %p170 = scmp.eq.s32.totalorder %s19, 0
    %p171 = por %p169, %p170
    %p172 = scmp.ne.s32.totalorder %s158, %s159
    %p173 = scmp.eq.s32.totalorder %s20, 4
    %p174 = por %p172, %p173
    %p176 = scmp.ne.s32.totalorder %s159, %s175
    %p177 = scmp.eq.s32.totalorder %s20, 0
    %p178 = por %p176, %p177
    %s179 = ssub.s32 %s14, %s21
    %p180 = scmp.eq.s32.totalorder %s179, 0
    %s182 = sadd.s32 %s181, 1
    %s183 = scalar_select %p180, %s181, %s182
    %p186 = pneg %p180
    %p187 = scmp.eq.s32.totalorder %s14, 4
    %p188 = por %p186, %p187
    %p189 = scmp.ne.s32.totalorder %s181, %s184
    %p190 = scmp.eq.s32.totalorder %s14, 0
    %p191 = por %p189, %p190
    %p192 = scmp.ne.s32.totalorder %s181, %s184
    %p193 = scmp.eq.s32.totalorder %s19, 4
    %p194 = por %p192, %p193
    %p195 = scmp.ne.s32.totalorder %s184, %s185
    %p196 = scmp.eq.s32.totalorder %s19, 0
    %p197 = por %p195, %p196
    %p198 = scmp.ne.s32.totalorder %s184, %s185
    %p199 = scmp.eq.s32.totalorder %s20, 4
    %p200 = por %p198, %p199
    %p202 = scmp.ne.s32.totalorder %s185, %s201
    %p203 = scmp.eq.s32.totalorder %s20, 0
    %p204 = por %p202, %p203
    %p205 = scmp.le.s32.totalorder 1, %s14
    %p206 = scmp.lt.s32.totalorder %s14, 6
    %p207 = pnand %p205, %p206
    %p208 = pneg %p207
    // Predicated region
    $region9: #{tpu_custom_call.1} parent=5 // pred_check
      _
    $region10: #{tpu_custom_call.1} parent=5 // pred_check_branch
      %210 = sbr.rel (%p207) target = $region12
    $region11: #{tpu_custom_call.1} parent=5 // pred_region
      %s211 = ssub.s32 %s14, 1
      // Predicated region
      $region13: #{tpu_custom_call.1} parent=11 // pred_check
        %p212 = pneg %p61
      $region14: #{tpu_custom_call.1} parent=11 // pred_check_branch
        %214 = sbr.rel (%p212) target = $region16
      $region15: #{tpu_custom_call.1} parent=11 // pred_region
        _
      $region16: #{tpu_custom_call.1} parent=11 // pred_fallthru
        _
      // Predicated region
      $region17: #{tpu_custom_call.1} parent=11 // pred_check
        %p215 = pneg %p82
      $region18: #{tpu_custom_call.1} parent=11 // pred_check_branch
        %217 = sbr.rel (%p215) target = $region20
      $region19: #{tpu_custom_call.1} parent=11 // pred_region
        _
      $region20: #{tpu_custom_call.1} parent=11 // pred_fallthru
        _
      // Predicated region
      $region21: #{tpu_custom_call.1} parent=11 // pred_check
        %p218 = pneg %p103
      $region22: #{tpu_custom_call.1} parent=11 // pred_check_branch
        %220 = sbr.rel (%p218) target = $region24
      $region23: #{tpu_custom_call.1} parent=11 // pred_region
        _
      $region24: #{tpu_custom_call.1} parent=11 // pred_fallthru
        _
      // Predicated region
      $region25: #{tpu_custom_call.1} parent=11 // pred_check
        %p221 = pneg %p124
      $region26: #{tpu_custom_call.1} parent=11 // pred_check_branch
        %223 = sbr.rel (%p221) target = $region28
      $region27: #{tpu_custom_call.1} parent=11 // pred_region
        _
      $region28: #{tpu_custom_call.1} parent=11 // pred_fallthru
        _
      // Predicated region
      $region29: #{tpu_custom_call.1} parent=11 // pred_check
        %p224 = pneg %p145
      $region30: #{tpu_custom_call.1} parent=11 // pred_check_branch
        %226 = sbr.rel (%p224) target = $region32
      $region31: #{tpu_custom_call.1} parent=11 // pred_region
        _
      $region32: #{tpu_custom_call.1} parent=11 // pred_fallthru
        _
    $region12: #{tpu_custom_call.1} parent=5 // pred_fallthru
      _
    %p227 = scmp.lt.s32.totalorder %s14, 5
    // Predicated region
    $region33: #{tpu_custom_call.1} parent=5 // pred_check
      %p228 = pneg %p227
    $region34: #{tpu_custom_call.1} parent=5 // pred_check_branch
      %230 = sbr.rel (%p228) target = $region36
    $region35: #{tpu_custom_call.1} parent=5 // pred_region
      // Predicated region
      $region37: #{tpu_custom_call.1} parent=35 // pred_check
        %p231 = pneg %p34
      $region38: #{tpu_custom_call.1} parent=35 // pred_check_branch
        %233 = sbr.rel (%p231) target = $region40
      $region39: #{tpu_custom_call.1} parent=35 // pred_region
        %s234 = smul.u32 16, %s14
        %p235 = scmp.lt.s32.totalorder %s234, 79
        %s236 = scalar_select %p235, %s234, 79
        %s237 = smul.addr %s236, 8
        %s238 = scalar_lea.vmem %s0, %s237
        %s239 = smul.u32 16, %s14
      $region40: #{tpu_custom_call.1} parent=35 // pred_fallthru
        _
    $region36: #{tpu_custom_call.1} parent=5 // pred_fallthru
      _
    %p240 = scmp.le.s32.totalorder 1, %s14
    %p241 = scmp.lt.s32.totalorder %s14, 6
    %p242 = pnand %p240, %p241
    %p243 = pneg %p242
    // Predicated region
    $region41: #{tpu_custom_call.1} parent=5 // pred_check
      _
    $region42: #{tpu_custom_call.1} parent=5 // pred_check_branch
      %245 = sbr.rel (%p242) target = $region44
    $region43: #{tpu_custom_call.1} parent=5 // pred_region
      %s246 = ssub.s32 %s14, 1
      %s247 = smul.u32 16, %s19
      %p248 = scmp.lt.s32.totalorder %s247, 79
      %s249 = scalar_select %p248, %s247, 79
      %s250 = smul.addr %s249, 8
      %s251 = scalar_lea.vmem %s0, %s250
      %p252 = pneg %p40
      %p253 = pneg %p37
      %p254 = pneg %p61
      %p255 = pneg %p58
      %p256 = pneg %p82
      %p257 = pneg %p79
      %p258 = pneg %p103
      %p259 = pneg %p100
      %p260 = pneg %p124
      %p261 = pneg %p121
      %p262 = pneg %p145
      %p263 = pneg %p142
      %p264 = pneg %p171
      %p265 = pneg %p168
      %s266 = smul.u32 16, %s19
      %p267 = scmp.lt.s32.totalorder %s266, 79
      %s268 = scalar_select %p267, %s266, 79
      %s269 = smul.addr %s268, 8
      %s270 = scalar_lea.vmem %s6, %s269
      %p271 = pneg %p197
      %p272 = pneg %p194
      %s273 = smul.u32 16, %s19
      %p274 = scmp.lt.s32.totalorder %s273, 79
      %s275 = scalar_select %p274, %s273, 79
      %s276 = smul.addr %s275, 8
      %s277 = scalar_lea.vmem %s7, %s276
      %s278 = smul.u32 16, %s19
      %p279 = scmp.lt.s32.totalorder %s278, 79
      %s280 = scalar_select %p279, %s278, 79
      %s281 = smul.addr %s280, 8
      %s282 = scalar_lea.vmem %s0, %s281
      %s283 = smul.u32 16, %s19
      %s284 = smul.u32 16, %s19
      %p285 = scmp.lt.s32.totalorder %s284, 79
      %s286 = scalar_select %p285, %s284, 79
      %s287 = smul.addr %s286, 8
      %s288 = scalar_lea.vmem %s6, %s287
      %s289 = smul.u32 16, %s19
      %s290 = smul.u32 16, %s19
      %p291 = scmp.lt.s32.totalorder %s290, 79
      %s292 = scalar_select %p291, %s290, 79
      %s293 = smul.addr %s292, 8
      %s294 = scalar_lea.vmem %s7, %s293
      %s295 = smul.u32 16, %s19
      %v296 = vld [vmem:[%s282] sm:$0xff]
      %v297 = vld [vmem:[%s282 + $0x8] sm:$0xff]
      %v298 = vld [vmem:[%s282 + $0x10] sm:$0xff]
      %v299 = vld [vmem:[%s282 + $0x18] sm:$0xff]
      %v300 = vld [vmem:[%s282 + $0x20] sm:$0xff]
      %v301 = vld [vmem:[%s282 + $0x28] sm:$0xff]
      %v302 = vld [vmem:[%s282 + $0x30] sm:$0xff]
      %v303 = vld [vmem:[%s282 + $0x38] sm:$0xff]
      %v304 = vld [vmem:[%s282 + $0x40] sm:$0xff]
      %v305 = vld [vmem:[%s282 + $0x48] sm:$0xff]
      %v306 = vld [vmem:[%s282 + $0x50] sm:$0xff]
      %v307 = vld [vmem:[%s282 + $0x58] sm:$0xff]
      %v308 = vld [vmem:[%s282 + $0x60] sm:$0xff]
      %v309 = vld [vmem:[%s282 + $0x68] sm:$0xff]
      %v310 = vld [vmem:[%s282 + $0x70] sm:$0xff]
      %v311 = vld [vmem:[%s282 + $0x78] sm:$0xff]
      %v312 = vld [vmem:[%s1] sm:$0xff]
      %v313 = vld [vmem:[%s1 + $0x8] sm:$0xff]
      %v314 = vld [vmem:[%s1 + $0x10] sm:$0xff]
      %v315 = vld [vmem:[%s1 + $0x18] sm:$0xff]
      %vm316 = vcmask 261120
      %v318 = vsel %vm316, %v296, 0
      %v321 = vsel %vm316, %v297, 0
      %v324 = vsel %vm316, %v298, 0
      %v327 = vsel %vm316, %v299, 0
      %v330 = vsel %vm316, %v300, 0
      %v333 = vsel %vm316, %v301, 0
      %v336 = vsel %vm316, %v302, 0
      %v339 = vsel %vm316, %v303, 0
      %v342 = vsel %vm316, %v304, 0
      %v345 = vsel %vm316, %v305, 0
      %v348 = vsel %vm316, %v306, 0
      %v351 = vsel %vm316, %v307, 0
      %v354 = vsel %vm316, %v308, 0
      %v357 = vsel %vm316, %v309, 0
      %v360 = vsel %vm316, %v310, 0
      %v363 = vsel %vm316, %v311, 0
      %365 = vmatprep.subr.mxu0 0.0
      %366 = vmatpush1.msra.mxu0 %v312
      %367 = vmatprep.subr.mxu0 0.0
      %368 = vmatpush1.msra.mxu0 %v313
      %369 = vmatprep.subr.mxu0 0.0
      %370 = vmatpush1.msra.mxu0 %v314
      %371 = vmatprep.subr.mxu0 0.0
      %372 = vmatpush1.msra.mxu0 %v315
      %373 = vmatprep.subr.mxu0 0.0
      %374 = vmatpush1.msra.mxu0 0.0
      %375 = vmatprep.subr.mxu0 0.0
      %376 = vmatpush1.msra.mxu0 0.0
      %377 = vmatprep.subr.mxu0 0.0
      %378 = vmatpush1.msra.mxu0 0.0
      %379 = vmatprep.subr.mxu0 0.0
      %380 = vmatpush1.msra.mxu0 0.0
      %381 = vmatprep.subr.mxu0 0.0
      %382 = vmatpush1.msra.mxu0 0.0
      %383 = vmatprep.subr.mxu0 0.0
      %384 = vmatpush1.msra.mxu0 0.0
      %385 = vmatprep.subr.mxu0 0.0
      %386 = vmatpush1.msra.mxu0 0.0
      %387 = vmatprep.subr.mxu0 0.0
      %388 = vmatpush1.msra.mxu0 0.0
      %389 = vmatprep.subr.mxu0 0.0
      %390 = vmatpush1.msra.mxu0 0.0
      %391 = vmatprep.subr.mxu0 0.0
      %392 = vmatpush1.msra.mxu0 0.0
      %393 = vmatprep.subr.mxu0 0.0
      %394 = vmatpush1.msra.mxu0 0.0
      %395 = vmatprep.subr.mxu0 0.0
      %396 = vmatpush1.msra.mxu0 0.0
      %397 = vmatprep.subr.mxu0 0.0
      %398 = vmatpush1.msra.mxu0 0.0
      %399 = vmatprep.subr.mxu0 0.0
      %400 = vmatpush1.msra.mxu0 0.0
      %401 = vmatprep.subr.mxu0 0.0
      %402 = vmatpush1.msra.mxu0 0.0
      %403 = vmatprep.subr.mxu0 0.0
      %404 = vmatpush1.msra.mxu0 0.0
      %405 = vmatprep.subr.mxu0 0.0
      %406 = vmatpush1.msra.mxu0 0.0
      %407 = vmatprep.subr.mxu0 0.0
      %408 = vmatpush1.msra.mxu0 0.0
      %409 = vmatprep.subr.mxu0 0.0
      %410 = vmatpush1.msra.mxu0 0.0
      %411 = vmatprep.subr.mxu0 0.0
      %412 = vmatpush1.msra.mxu0 0.0
      %413 = vmatprep.subr.mxu0 0.0
      %414 = vmatpush1.msra.mxu0 0.0
      %415 = vmatprep.subr.mxu0 0.0
      %416 = vmatpush1.msra.mxu0 0.0
      %417 = vmatprep.subr.mxu0 0.0
      %418 = vmatpush1.msra.mxu0 0.0
      %419 = vmatprep.subr.mxu0 0.0
      %420 = vmatpush1.msra.mxu0 0.0
      %421 = vmatprep.subr.mxu0 0.0
      %422 = vmatpush1.msra.mxu0 0.0
      %423 = vmatprep.subr.mxu0 0.0
      %424 = vmatpush1.msra.mxu0 0.0
      %425 = vmatprep.subr.mxu0 0.0
      %426 = vmatpush1.msra.mxu0 0.0
      %427 = vmatprep.subr.mxu0 0.0
      %428 = vmatpush1.msra.mxu0 0.0
      %429 = vmatprep.mubr.f32.mxu0 0.0
      %430 = vmatmul.mubr.f32.gmra.mrb[0].mxu0 %v318
      %v431 = vpop.f32.mrb[0].mxu0
      %v432 = vadd.f32 0.0, %v431
      %v433 = vpop.f32.mrb[0].mxu0
      %434 = vmatprep.mubr.f32.mxu0 0.0
      %435 = vmatmul.mubr.f32.gmra.mrb[0].mxu0 %v321
      %v436 = vpop.f32.mrb[0].mxu0
      %v437 = vadd.f32 0.0, %v436
      %v438 = vpop.f32.mrb[0].mxu0
      %439 = vmatprep.mubr.f32.mxu0 0.0
      %440 = vmatmul.mubr.f32.gmra.mrb[0].mxu0 %v324
      %v441 = vpop.f32.mrb[0].mxu0
      %v442 = vadd.f32 0.0, %v441
      %v443 = vpop.f32.mrb[0].mxu0
      %444 = vmatprep.mubr.f32.mxu0 0.0
      %445 = vmatmul.mubr.f32.gmra.mrb[0].mxu0 %v327
      %v446 = vpop.f32.mrb[0].mxu0
      %v447 = vadd.f32 0.0, %v446
      %v448 = vpop.f32.mrb[0].mxu0
      %449 = vmatprep.mubr.f32.mxu0 0.0
      %450 = vmatmul.mubr.f32.gmra.mrb[0].mxu0 %v330
      %v451 = vpop.f32.mrb[0].mxu0
      %v452 = vadd.f32 0.0, %v451
      %v453 = vpop.f32.mrb[0].mxu0
      %454 = vmatprep.mubr.f32.mxu0 0.0
      %455 = vmatmul.mubr.f32.gmra.mrb[0].mxu0 %v333
      %v456 = vpop.f32.mrb[0].mxu0
      %v457 = vadd.f32 0.0, %v456
      %v458 = vpop.f32.mrb[0].mxu0
      %459 = vmatprep.mubr.f32.mxu0 0.0
      %460 = vmatmul.mubr.f32.gmra.mrb[0].mxu0 %v336
      %v461 = vpop.f32.mrb[0].mxu0
      %v462 = vadd.f32 0.0, %v461
      %v463 = vpop.f32.mrb[0].mxu0
      %464 = vmatprep.mubr.f32.mxu0 0.0
      %465 = vmatmul.mubr.f32.gmra.mrb[0].mxu0 %v339
      %v466 = vpop.f32.mrb[0].mxu0
      %v467 = vadd.f32 0.0, %v466
      %v468 = vpop.f32.mrb[0].mxu0
      %469 = vmatprep.mubr.f32.mxu0 0.0
      %470 = vmatmul.mubr.f32.gmra.mrb[0].mxu0 %v342
      %v471 = vpop.f32.mrb[0].mxu0
      %v472 = vadd.f32 0.0, %v471
      %v473 = vpop.f32.mrb[0].mxu0
      %474 = vmatprep.mubr.f32.mxu0 0.0
      %475 = vmatmul.mubr.f32.gmra.mrb[0].mxu0 %v345
      %v476 = vpop.f32.mrb[0].mxu0
      %v477 = vadd.f32 0.0, %v476
      %v478 = vpop.f32.mrb[0].mxu0
      %479 = vmatprep.mubr.f32.mxu0 0.0
      %480 = vmatmul.mubr.f32.gmra.mrb[0].mxu0 %v348
      %v481 = vpop.f32.mrb[0].mxu0
      %v482 = vadd.f32 0.0, %v481
      %v483 = vpop.f32.mrb[0].mxu0
      %484 = vmatprep.mubr.f32.mxu0 0.0
      %485 = vmatmul.mubr.f32.gmra.mrb[0].mxu0 %v351
      %v486 = vpop.f32.mrb[0].mxu0
      %v487 = vadd.f32 0.0, %v486
      %v488 = vpop.f32.mrb[0].mxu0
      %489 = vmatprep.mubr.f32.mxu0 0.0
      %490 = vmatmul.mubr.f32.gmra.mrb[0].mxu0 %v354
      %v491 = vpop.f32.mrb[0].mxu0
      %v492 = vadd.f32 0.0, %v491
      %v493 = vpop.f32.mrb[0].mxu0
      %494 = vmatprep.mubr.f32.mxu0 0.0
      %495 = vmatmul.mubr.f32.gmra.mrb[0].mxu0 %v357
      %v496 = vpop.f32.mrb[0].mxu0
      %v497 = vadd.f32 0.0, %v496
      %v498 = vpop.f32.mrb[0].mxu0
      %499 = vmatprep.mubr.f32.mxu0 0.0
      %500 = vmatmul.mubr.f32.gmra.mrb[0].mxu0 %v360
      %v501 = vpop.f32.mrb[0].mxu0
      %v502 = vadd.f32 0.0, %v501
      %v503 = vpop.f32.mrb[0].mxu0
      %504 = vmatprep.mubr.f32.mxu0 0.0
      %505 = vmatmul.mubr.f32.gmra.mrb[0].mxu0 %v363
      %v506 = vpop.f32.mrb[0].mxu0
      %v507 = vadd.f32 0.0, %v506
      %v508 = vpop.f32.mrb[0].mxu0
      %509 = vdwg.mxu0
      %v510 = vlog2.pop %v432
      %v511 = vmul.f32 %v510, 0.6931472
      %v512 = vlog2.pop %v437
      %v513 = vmul.f32 %v512, 0.6931472
      %v514 = vlog2.pop %v442
      %v515 = vmul.f32 %v514, 0.6931472
      %v516 = vlog2.pop %v447
      %v517 = vmul.f32 %v516, 0.6931472
      %v518 = vlog2.pop %v452
      %v519 = vmul.f32 %v518, 0.6931472
      %v520 = vlog2.pop %v457
      %v521 = vmul.f32 %v520, 0.6931472
      %v522 = vlog2.pop %v462
      %v523 = vmul.f32 %v522, 0.6931472
      %v524 = vlog2.pop %v467
      %v525 = vmul.f32 %v524, 0.6931472
      %v526 = vlog2.pop %v472
      %v527 = vmul.f32 %v526, 0.6931472
      %v528 = vlog2.pop %v477
      %v529 = vmul.f32 %v528, 0.6931472
      %v530 = vlog2.pop %v482
      %v531 = vmul.f32 %v530, 0.6931472
      %v532 = vlog2.pop %v487
      %v533 = vmul.f32 %v532, 0.6931472
      %v534 = vlog2.pop %v492
      %v535 = vmul.f32 %v534, 0.6931472
      %v536 = vlog2.pop %v497
      %v537 = vmul.f32 %v536, 0.6931472
      %v538 = vlog2.pop %v502
      %v539 = vmul.f32 %v538, 0.6931472
      %v540 = vlog2.pop %v507
      %v541 = vmul.f32 %v540, 0.6931472
      %v542 = vmul.f32 %v511, 0.4342945
      %v543 = vmul.f32 %v513, 0.4342945
      %v544 = vmul.f32 %v515, 0.4342945
      %v545 = vmul.f32 %v517, 0.4342945
      %v546 = vmul.f32 %v519, 0.4342945
      %v547 = vmul.f32 %v521, 0.4342945
      %v548 = vmul.f32 %v523, 0.4342945
      %v549 = vmul.f32 %v525, 0.4342945
      %v550 = vmul.f32 %v527, 0.4342945
      %v551 = vmul.f32 %v529, 0.4342945
      %v552 = vmul.f32 %v531, 0.4342945
      %v553 = vmul.f32 %v533, 0.4342945
      %v554 = vmul.f32 %v535, 0.4342945
      %v555 = vmul.f32 %v537, 0.4342945
      %v556 = vmul.f32 %v539, 0.4342945
      %v557 = vmul.f32 %v541, 0.4342945
      %vm558 = vcmask 113664
      %559 = vst.msk [vmem:[%s294] sm:$0xff] %vm558, %v542
      %560 = vst.msk [vmem:[%s294 + $0x8] sm:$0xff] %vm558, %v543
      %561 = vst.msk [vmem:[%s294 + $0x10] sm:$0xff] %vm558, %v544
      %562 = vst.msk [vmem:[%s294 + $0x18] sm:$0xff] %vm558, %v545
      %563 = vst.msk [vmem:[%s294 + $0x20] sm:$0xff] %vm558, %v546
      %564 = vst.msk [vmem:[%s294 + $0x28] sm:$0xff] %vm558, %v547
      %565 = vst.msk [vmem:[%s294 + $0x30] sm:$0xff] %vm558, %v548
      %566 = vst.msk [vmem:[%s294 + $0x38] sm:$0xff] %vm558, %v549
      %567 = vst.msk [vmem:[%s294 + $0x40] sm:$0xff] %vm558, %v550
      %568 = vst.msk [vmem:[%s294 + $0x48] sm:$0xff] %vm558, %v551
      %569 = vst.msk [vmem:[%s294 + $0x50] sm:$0xff] %vm558, %v552
      %570 = vst.msk [vmem:[%s294 + $0x58] sm:$0xff] %vm558, %v553
      %571 = vst.msk [vmem:[%s294 + $0x60] sm:$0xff] %vm558, %v554
      %572 = vst.msk [vmem:[%s294 + $0x68] sm:$0xff] %vm558, %v555
      %573 = vst.msk [vmem:[%s294 + $0x70] sm:$0xff] %vm558, %v556
      %574 = vst.msk [vmem:[%s294 + $0x78] sm:$0xff] %vm558, %v557
      %v575 = vsub.f32 %v542, 4.0
      %v576 = vsub.f32 %v543, 4.0
      %v577 = vsub.f32 %v544, 4.0
      %v578 = vsub.f32 %v545, 4.0
      %v579 = vsub.f32 %v546, 4.0
      %v580 = vsub.f32 %v547, 4.0
      %v581 = vsub.f32 %v548, 4.0
      %v582 = vsub.f32 %v549, 4.0
      %v583 = vsub.f32 %v550, 4.0
      %v584 = vsub.f32 %v551, 4.0
      %v585 = vsub.f32 %v552, 4.0
      %v586 = vsub.f32 %v553, 4.0
      %v587 = vsub.f32 %v554, 4.0
      %v588 = vsub.f32 %v555, 4.0
      %v589 = vsub.f32 %v556, 4.0
      %v590 = vsub.f32 %v557, 4.0
      %v591 = vmul.f32 %v575, 0.25
      %v592 = vmul.f32 %v576, 0.25
      %v593 = vmul.f32 %v577, 0.25
      %v594 = vmul.f32 %v578, 0.25
      %v595 = vmul.f32 %v579, 0.25
      %v596 = vmul.f32 %v580, 0.25
      %v597 = vmul.f32 %v581, 0.25
      %v598 = vmul.f32 %v582, 0.25
      %v599 = vmul.f32 %v583, 0.25
      %v600 = vmul.f32 %v584, 0.25
      %v601 = vmul.f32 %v585, 0.25
      %v602 = vmul.f32 %v586, 0.25
      %v603 = vmul.f32 %v587, 0.25
      %v604 = vmul.f32 %v588, 0.25
      %v605 = vmul.f32 %v589, 0.25
      %v606 = vmul.f32 %v590, 0.25
      %v607 = vtanh.pop %v591
      %v608 = vtanh.pop %v592
      %v609 = vtanh.pop %v593
      %v610 = vtanh.pop %v594
      %v611 = vtanh.pop %v595
      %v612 = vtanh.pop %v596
      %v613 = vtanh.pop %v597
      %v614 = vtanh.pop %v598
      %v615 = vtanh.pop %v599
      %v616 = vtanh.pop %v600
      %v617 = vtanh.pop %v601
      %v618 = vtanh.pop %v602
      %v619 = vtanh.pop %v603
      %v620 = vtanh.pop %v604
      %v621 = vtanh.pop %v605
      %v622 = vtanh.pop %v606
      %v623 = vld [vmem:[%s2] sm:$0xff]
      %v624 = vld [vmem:[%s2 + $0x8] sm:$0x3f]
      %v626 = vsel %vm558, %v607, 0
      %v629 = vsel %vm558, %v608, 0
      %v632 = vsel %vm558, %v609, 0
      %v635 = vsel %vm558, %v610, 0
      %v638 = vsel %vm558, %v611, 0
      %v641 = vsel %vm558, %v612, 0
      %v644 = vsel %vm558, %v613, 0
      %v647 = vsel %vm558, %v614, 0
      %v650 = vsel %vm558, %v615, 0
      %v653 = vsel %vm558, %v616, 0
      %v656 = vsel %vm558, %v617, 0
      %v659 = vsel %vm558, %v618, 0
      %v662 = vsel %vm558, %v619, 0
      %v665 = vsel %vm558, %v620, 0
      %v668 = vsel %vm558, %v621, 0
      %v671 = vsel %vm558, %v622, 0
      %vm673 = vcmask 1045504
      %v675 = vsel %vm673, %v624, 0
      %677 = vmatprep.subr.mxu0 0.0
      %678 = vmatpush1.msra.mxu0 %v623
      %679 = vmatprep.subr.mxu0 0.0
      %680 = vmatpush1.msra.mxu0 %v675
      %681 = vmatprep.subr.mxu0 0.0
      %682 = vmatpush1.msra.mxu0 0.0
      %683 = vmatprep.subr.mxu0 0.0
      %684 = vmatpush1.msra.mxu0 0.0
      %685 = vmatprep.subr.mxu0 0.0
      %686 = vmatpush1.msra.mxu0 0.0
      %687 = vmatprep.subr.mxu0 0.0
      %688 = vmatpush1.msra.mxu0 0.0
      %689 = vmatprep.subr.mxu0 0.0
      %690 = vmatpush1.msra.mxu0 0.0
      %691 = vmatprep.subr.mxu0 0.0
      %692 = vmatpush1.msra.mxu0 0.0
      %693 = vmatprep.subr.mxu0 0.0
      %694 = vmatpush1.msra.mxu0 0.0
      %695 = vmatprep.subr.mxu0 0.0
      %696 = vmatpush1.msra.mxu0 0.0
      %697 = vmatprep.subr.mxu0 0.0
      %698 = vmatpush1.msra.mxu0 0.0
      %699 = vmatprep.subr.mxu0 0.0
      %700 = vmatpush1.msra.mxu0 0.0
      %701 = vmatprep.subr.mxu0 0.0
      %702 = vmatpush1.msra.mxu0 0.0
      %703 = vmatprep.subr.mxu0 0.0
      %704 = vmatpush1.msra.mxu0 0.0
      %705 = vmatprep.subr.mxu0 0.0
      %706 = vmatpush1.msra.mxu0 0.0
      %707 = vmatprep.subr.mxu0 0.0
      %708 = vmatpush1.msra.mxu0 0.0
      %709 = vmatprep.subr.mxu0 0.0
      %710 = vmatpush1.msra.mxu0 0.0
      %711 = vmatprep.subr.mxu0 0.0
      %712 = vmatpush1.msra.mxu0 0.0
      %713 = vmatprep.subr.mxu0 0.0
      %714 = vmatpush1.msra.mxu0 0.0
      %715 = vmatprep.subr.mxu0 0.0
      %716 = vmatpush1.msra.mxu0 0.0
      %717 = vmatprep.subr.mxu0 0.0
      %718 = vmatpush1.msra.mxu0 0.0
      %719 = vmatprep.subr.mxu0 0.0
      %720 = vmatpush1.msra.mxu0 0.0
      %721 = vmatprep.subr.mxu0 0.0
      %722 = vmatpush1.msra.mxu0 0.0
      %723 = vmatprep.subr.mxu0 0.0
      %724 = vmatpush1.msra.mxu0 0.0
      %725 = vmatprep.subr.mxu0 0.0
      %726 = vmatpush1.msra.mxu0 0.0
      %727 = vmatprep.subr.mxu0 0.0
      %728 = vmatpush1.msra.mxu0 0.0
      %729 = vmatprep.subr.mxu0 0.0
      %730 = vmatpush1.msra.mxu0 0.0
      %731 = vmatprep.subr.mxu0 0.0
      %732 = vmatpush1.msra.mxu0 0.0
      %733 = vmatprep.subr.mxu0 0.0
      %734 = vmatpush1.msra.mxu0 0.0
      %735 = vmatprep.subr.mxu0 0.0
      %736 = vmatpush1.msra.mxu0 0.0
      %737 = vmatprep.subr.mxu0 0.0
      %738 = vmatpush1.msra.mxu0 0.0
      %739 = vmatprep.subr.mxu0 0.0
      %740 = vmatpush1.msra.mxu0 0.0
      %741 = vmatprep.mubr.f32.mxu0 0.0
      %742 = vmatmul.mubr.f32.gmra.mrb[0].mxu0 %v626
      %v743 = vpop.f32.mrb[0].mxu0
      %v744 = vadd.f32 0.0, %v743
      %v745 = vpop.f32.mrb[0].mxu0
      %746 = vmatprep.mubr.f32.mxu0 0.0
      %747 = vmatmul.mubr.f32.gmra.mrb[0].mxu0 %v629
      %v748 = vpop.f32.mrb[0].mxu0
      %v749 = vadd.f32 0.0, %v748
      %v750 = vpop.f32.mrb[0].mxu0
      %751 = vmatprep.mubr.f32.mxu0 0.0
      %752 = vmatmul.mubr.f32.gmra.mrb[0].mxu0 %v632
      %v753 = vpop.f32.mrb[0].mxu0
      %v754 = vadd.f32 0.0, %v753
      %v755 = vpop.f32.mrb[0].mxu0
      %756 = vmatprep.mubr.f32.mxu0 0.0
      %757 = vmatmul.mubr.f32.gmra.mrb[0].mxu0 %v635
      %v758 = vpop.f32.mrb[0].mxu0
      %v759 = vadd.f32 0.0, %v758
      %v760 = vpop.f32.mrb[0].mxu0
      %761 = vmatprep.mubr.f32.mxu0 0.0
      %762 = vmatmul.mubr.f32.gmra.mrb[0].mxu0 %v638
      %v763 = vpop.f32.mrb[0].mxu0
      %v764 = vadd.f32 0.0, %v763
      %v765 = vpop.f32.mrb[0].mxu0
      %766 = vmatprep.mubr.f32.mxu0 0.0
      %767 = vmatmul.mubr.f32.gmra.mrb[0].mxu0 %v641
      %v768 = vpop.f32.mrb[0].mxu0
      %v769 = vadd.f32 0.0, %v768
      %v770 = vpop.f32.mrb[0].mxu0
      %771 = vmatprep.mubr.f32.mxu0 0.0
      %772 = vmatmul.mubr.f32.gmra.mrb[0].mxu0 %v644
      %v773 = vpop.f32.mrb[0].mxu0
      %v774 = vadd.f32 0.0, %v773
      %v775 = vpop.f32.mrb[0].mxu0
      %776 = vmatprep.mubr.f32.mxu0 0.0
      %777 = vmatmul.mubr.f32.gmra.mrb[0].mxu0 %v647
      %v778 = vpop.f32.mrb[0].mxu0
      %v779 = vadd.f32 0.0, %v778
      %v780 = vpop.f32.mrb[0].mxu0
      %781 = vmatprep.mubr.f32.mxu0 0.0
      %782 = vmatmul.mubr.f32.gmra.mrb[0].mxu0 %v650
      %v783 = vpop.f32.mrb[0].mxu0
      %v784 = vadd.f32 0.0, %v783
      %v785 = vpop.f32.mrb[0].mxu0
      %786 = vmatprep.mubr.f32.mxu0 0.0
      %787 = vmatmul.mubr.f32.gmra.mrb[0].mxu0 %v653
      %v788 = vpop.f32.mrb[0].mxu0
      %v789 = vadd.f32 0.0, %v788
      %v790 = vpop.f32.mrb[0].mxu0
      %791 = vmatprep.mubr.f32.mxu0 0.0
      %792 = vmatmul.mubr.f32.gmra.mrb[0].mxu0 %v656
      %v793 = vpop.f32.mrb[0].mxu0
      %v794 = vadd.f32 0.0, %v793
      %v795 = vpop.f32.mrb[0].mxu0
      %796 = vmatprep.mubr.f32.mxu0 0.0
      %797 = vmatmul.mubr.f32.gmra.mrb[0].mxu0 %v659
      %v798 = vpop.f32.mrb[0].mxu0
      %v799 = vadd.f32 0.0, %v798
      %v800 = vpop.f32.mrb[0].mxu0
      %801 = vmatprep.mubr.f32.mxu0 0.0
      %802 = vmatmul.mubr.f32.gmra.mrb[0].mxu0 %v662
      %v803 = vpop.f32.mrb[0].mxu0
      %v804 = vadd.f32 0.0, %v803
      %v805 = vpop.f32.mrb[0].mxu0
      %806 = vmatprep.mubr.f32.mxu0 0.0
      %807 = vmatmul.mubr.f32.gmra.mrb[0].mxu0 %v665
      %v808 = vpop.f32.mrb[0].mxu0
      %v809 = vadd.f32 0.0, %v808
      %v810 = vpop.f32.mrb[0].mxu0
      %811 = vmatprep.mubr.f32.mxu0 0.0
      %812 = vmatmul.mubr.f32.gmra.mrb[0].mxu0 %v668
      %v813 = vpop.f32.mrb[0].mxu0
      %v814 = vadd.f32 0.0, %v813
      %v815 = vpop.f32.mrb[0].mxu0
      %816 = vmatprep.mubr.f32.mxu0 0.0
      %817 = vmatmul.mubr.f32.gmra.mrb[0].mxu0 %v671
      %v818 = vpop.f32.mrb[0].mxu0
      %v819 = vadd.f32 0.0, %v818
      %v820 = vpop.f32.mrb[0].mxu0
      %821 = vdwg.mxu0
      %v822 = vld [vmem:[%s3] sm:$0x1]
      %v824 = vlaneseq
      %v825 = vshrl.u32 %v824, 7
      %v826 = vsub.s32 0, %v825
      %v827 = vrot.slane %v822, %v826
      %828 = vrot.lane.b32.xlu0 %v827, 10
      %v829 = vpop.permute.xlu0 %828
      %v831 = vadd.f32 %v744, %v829
      %v832 = vadd.f32 %v749, %v829
      %v833 = vadd.f32 %v754, %v829
      %v834 = vadd.f32 %v759, %v829
      %v835 = vadd.f32 %v764, %v829
      %v836 = vadd.f32 %v769, %v829
      %v837 = vadd.f32 %v774, %v829
      %v838 = vadd.f32 %v779, %v829
      %v839 = vadd.f32 %v784, %v829
      %v840 = vadd.f32 %v789, %v829
      %v841 = vadd.f32 %v794, %v829
      %v842 = vadd.f32 %v799, %v829
      %v843 = vadd.f32 %v804, %v829
      %v844 = vadd.f32 %v809, %v829
      %v845 = vadd.f32 %v814, %v829
      %v846 = vadd.f32 %v819, %v829
      %v847 = vmax.f32 %v831, 0.0
      %v848 = vmax.f32 %v832, 0.0
      %v849 = vmax.f32 %v833, 0.0
      %v850 = vmax.f32 %v834, 0.0
      %v851 = vmax.f32 %v835, 0.0
      %v852 = vmax.f32 %v836, 0.0
      %v853 = vmax.f32 %v837, 0.0
      %v854 = vmax.f32 %v838, 0.0
      %v855 = vmax.f32 %v839, 0.0
      %v856 = vmax.f32 %v840, 0.0
      %v857 = vmax.f32 %v841, 0.0
      %v858 = vmax.f32 %v842, 0.0
      %v859 = vmax.f32 %v843, 0.0
      %v860 = vmax.f32 %v844, 0.0
      %v861 = vmax.f32 %v845, 0.0
      %v862 = vmax.f32 %v846, 0.0
      %v863 = vld [vmem:[%s4] sm:$0xff]
      %v864 = vld [vmem:[%s4 + $0x8] sm:$0x3f]
      %v865 = vld [vmem:[%s5] sm:$0x1]
      %v867 = vlaneseq
      %v868 = vshrl.u32 %v867, 7
      %v869 = vsub.s32 0, %v868
      %v870 = vrot.slane %v865, %v869
      %888 = vrot.lane.b32.xlu0 %v847, 118
      %v889 = vpop.permute.xlu0 %888
      %890 = vrot.lane.b32.xlu0 %v848, 118
      %v891 = vpop.permute.xlu0 %890
      %892 = vrot.lane.b32.xlu0 %v849, 118
      %v893 = vpop.permute.xlu0 %892
      %894 = vrot.lane.b32.xlu0 %v850, 118
      %v895 = vpop.permute.xlu0 %894
      %896 = vrot.lane.b32.xlu0 %v851, 118
      %v897 = vpop.permute.xlu0 %896
      %898 = vrot.lane.b32.xlu0 %v852, 118
      %v899 = vpop.permute.xlu0 %898
      %900 = vrot.lane.b32.xlu0 %v853, 118
      %v901 = vpop.permute.xlu0 %900
      %902 = vrot.lane.b32.xlu0 %v854, 118
      %v903 = vpop.permute.xlu0 %902
      %904 = vrot.lane.b32.xlu0 %v855, 118
      %v905 = vpop.permute.xlu0 %904
      %906 = vrot.lane.b32.xlu0 %v856, 118
      %v907 = vpop.permute.xlu0 %906
      %908 = vrot.lane.b32.xlu0 %v857, 118
      %v909 = vpop.permute.xlu0 %908
      %910 = vrot.lane.b32.xlu0 %v858, 118
      %v911 = vpop.permute.xlu0 %910
      %912 = vrot.lane.b32.xlu0 %v859, 118
      %v913 = vpop.permute.xlu0 %912
      %914 = vrot.lane.b32.xlu0 %v860, 118
      %v915 = vpop.permute.xlu0 %914
      %916 = vrot.lane.b32.xlu0 %v861, 118
      %v917 = vpop.permute.xlu0 %916
      %918 = vrot.lane.b32.xlu0 %v862, 118
      %v919 = vpop.permute.xlu0 %918
      %v920 = vsel %vm558, %v889, 0
      %v922 = vsel %vm558, %v891, 0
      %v924 = vsel %vm558, %v893, 0
      %v926 = vsel %vm558, %v895, 0
      %v928 = vsel %vm558, %v897, 0
      %v930 = vsel %vm558, %v899, 0
      %v932 = vsel %vm558, %v901, 0
      %v934 = vsel %vm558, %v903, 0
      %v936 = vsel %vm558, %v905, 0
      %v938 = vsel %vm558, %v907, 0
      %v940 = vsel %vm558, %v909, 0
      %v942 = vsel %vm558, %v911, 0
      %v944 = vsel %vm558, %v913, 0
      %v946 = vsel %vm558, %v915, 0
      %v948 = vsel %vm558, %v917, 0
      %v950 = vsel %vm558, %v919, 0
      %v953 = vsel %vm673, %v864, 0
      %955 = vmatprep.subr.mxu0 0.0
      %956 = vmatpush1.msra.mxu0 %v863
      %957 = vmatprep.subr.mxu0 0.0
      %958 = vmatpush1.msra.mxu0 %v953
      %959 = vmatprep.subr.mxu0 0.0
      %960 = vmatpush1.msra.mxu0 0.0
      %961 = vmatprep.subr.mxu0 0.0
      %962 = vmatpush1.msra.mxu0 0.0
      %963 = vmatprep.subr.mxu0 0.0
      %964 = vmatpush1.msra.mxu0 0.0
      %965 = vmatprep.subr.mxu0 0.0
      %966 = vmatpush1.msra.mxu0 0.0
      %967 = vmatprep.subr.mxu0 0.0
      %968 = vmatpush1.msra.mxu0 0.0
      %969 = vmatprep.subr.mxu0 0.0
      %970 = vmatpush1.msra.mxu0 0.0
      %971 = vmatprep.subr.mxu0 0.0
      %972 = vmatpush1.msra.mxu0 0.0
      %973 = vmatprep.subr.mxu0 0.0
      %974 = vmatpush1.msra.mxu0 0.0
      %975 = vmatprep.subr.mxu0 0.0
      %976 = vmatpush1.msra.mxu0 0.0
      %977 = vmatprep.subr.mxu0 0.0
      %978 = vmatpush1.msra.mxu0 0.0
      %979 = vmatprep.subr.mxu0 0.0
      %980 = vmatpush1.msra.mxu0 0.0
      %981 = vmatprep.subr.mxu0 0.0
      %982 = vmatpush1.msra.mxu0 0.0
      %983 = vmatprep.subr.mxu0 0.0
      %984 = vmatpush1.msra.mxu0 0.0
      %985 = vmatprep.subr.mxu0 0.0
      %986 = vmatpush1.msra.mxu0 0.0
      %987 = vmatprep.subr.mxu0 0.0
      %988 = vmatpush1.msra.mxu0 0.0
      %989 = vmatprep.subr.mxu0 0.0
      %990 = vmatpush1.msra.mxu0 0.0
      %991 = vmatprep.subr.mxu0 0.0
      %992 = vmatpush1.msra.mxu0 0.0
      %993 = vmatprep.subr.mxu0 0.0
      %994 = vmatpush1.msra.mxu0 0.0
      %995 = vmatprep.subr.mxu0 0.0
      %996 = vmatpush1.msra.mxu0 0.0
      %997 = vmatprep.subr.mxu0 0.0
      %998 = vmatpush1.msra.mxu0 0.0
      %999 = vmatprep.subr.mxu0 0.0
      %1000 = vmatpush1.msra.mxu0 0.0
      %1001 = vmatprep.subr.mxu0 0.0
      %1002 = vmatpush1.msra.mxu0 0.0
      %1003 = vmatprep.subr.mxu0 0.0
      %1004 = vmatpush1.msra.mxu0 0.0
      %1005 = vmatprep.subr.mxu0 0.0
      %1006 = vmatpush1.msra.mxu0 0.0
      %1007 = vmatprep.subr.mxu0 0.0
      %1008 = vmatpush1.msra.mxu0 0.0
      %1009 = vmatprep.subr.mxu0 0.0
      %1010 = vmatpush1.msra.mxu0 0.0
      %1011 = vmatprep.subr.mxu0 0.0
      %1012 = vmatpush1.msra.mxu0 0.0
      %1013 = vmatprep.subr.mxu0 0.0
      %1014 = vmatpush1.msra.mxu0 0.0
      %1015 = vmatprep.subr.mxu0 0.0
      %1016 = vmatpush1.msra.mxu0 0.0
      %1017 = vmatprep.subr.mxu0 0.0
      %1018 = vmatpush1.msra.mxu0 0.0
      %1019 = vmatprep.mubr.f32.mxu0 0.0
      %1020 = vmatmul.mubr.f32.gmra.mrb[0].mxu0 %v920
      %v1021 = vpop.f32.mrb[0].mxu0
      %v1022 = vadd.f32 %v870, %v1021
      %v1023 = vpop.f32.mrb[0].mxu0
      %1024 = vmatprep.mubr.f32.mxu0 0.0
      %1025 = vmatmul.mubr.f32.gmra.mrb[0].mxu0 %v922
      %v1026 = vpop.f32.mrb[0].mxu0
      %v1027 = vadd.f32 %v870, %v1026
      %v1028 = vpop.f32.mrb[0].mxu0
      %1029 = vmatprep.mubr.f32.mxu0 0.0
      %1030 = vmatmul.mubr.f32.gmra.mrb[0].mxu0 %v924
      %v1031 = vpop.f32.mrb[0].mxu0
      %v1032 = vadd.f32 %v870, %v1031
      %v1033 = vpop.f32.mrb[0].mxu0
      %1034 = vmatprep.mubr.f32.mxu0 0.0
      %1035 = vmatmul.mubr.f32.gmra.mrb[0].mxu0 %v926
      %v1036 = vpop.f32.mrb[0].mxu0
      %v1037 = vadd.f32 %v870, %v1036
      %v1038 = vpop.f32.mrb[0].mxu0
      %1039 = vmatprep.mubr.f32.mxu0 0.0
      %1040 = vmatmul.mubr.f32.gmra.mrb[0].mxu0 %v928
      %v1041 = vpop.f32.mrb[0].mxu0
      %v1042 = vadd.f32 %v870, %v1041
      %v1043 = vpop.f32.mrb[0].mxu0
      %1044 = vmatprep.mubr.f32.mxu0 0.0
      %1045 = vmatmul.mubr.f32.gmra.mrb[0].mxu0 %v930
      %v1046 = vpop.f32.mrb[0].mxu0
      %v1047 = vadd.f32 %v870, %v1046
      %v1048 = vpop.f32.mrb[0].mxu0
      %1049 = vmatprep.mubr.f32.mxu0 0.0
      %1050 = vmatmul.mubr.f32.gmra.mrb[0].mxu0 %v932
      %v1051 = vpop.f32.mrb[0].mxu0
      %v1052 = vadd.f32 %v870, %v1051
      %v1053 = vpop.f32.mrb[0].mxu0
      %1054 = vmatprep.mubr.f32.mxu0 0.0
      %1055 = vmatmul.mubr.f32.gmra.mrb[0].mxu0 %v934
      %v1056 = vpop.f32.mrb[0].mxu0
      %v1057 = vadd.f32 %v870, %v1056
      %v1058 = vpop.f32.mrb[0].mxu0
      %1059 = vmatprep.mubr.f32.mxu0 0.0
      %1060 = vmatmul.mubr.f32.gmra.mrb[0].mxu0 %v936
      %v1061 = vpop.f32.mrb[0].mxu0
      %v1062 = vadd.f32 %v870, %v1061
      %v1063 = vpop.f32.mrb[0].mxu0
      %1064 = vmatprep.mubr.f32.mxu0 0.0
      %1065 = vmatmul.mubr.f32.gmra.mrb[0].mxu0 %v938
      %v1066 = vpop.f32.mrb[0].mxu0
      %v1067 = vadd.f32 %v870, %v1066
      %v1068 = vpop.f32.mrb[0].mxu0
      %1069 = vmatprep.mubr.f32.mxu0 0.0
      %1070 = vmatmul.mubr.f32.gmra.mrb[0].mxu0 %v940
      %v1071 = vpop.f32.mrb[0].mxu0
      %v1072 = vadd.f32 %v870, %v1071
      %v1073 = vpop.f32.mrb[0].mxu0
      %1074 = vmatprep.mubr.f32.mxu0 0.0
      %1075 = vmatmul.mubr.f32.gmra.mrb[0].mxu0 %v942
      %v1076 = vpop.f32.mrb[0].mxu0
      %v1077 = vadd.f32 %v870, %v1076
      %v1078 = vpop.f32.mrb[0].mxu0
      %1079 = vmatprep.mubr.f32.mxu0 0.0
      %1080 = vmatmul.mubr.f32.gmra.mrb[0].mxu0 %v944
      %v1081 = vpop.f32.mrb[0].mxu0
      %v1082 = vadd.f32 %v870, %v1081
      %v1083 = vpop.f32.mrb[0].mxu0
      %1084 = vmatprep.mubr.f32.mxu0 0.0
      %1085 = vmatmul.mubr.f32.gmra.mrb[0].mxu0 %v946
      %v1086 = vpop.f32.mrb[0].mxu0
      %v1087 = vadd.f32 %v870, %v1086
      %v1088 = vpop.f32.mrb[0].mxu0
      %1089 = vmatprep.mubr.f32.mxu0 0.0
      %1090 = vmatmul.mubr.f32.gmra.mrb[0].mxu0 %v948
      %v1091 = vpop.f32.mrb[0].mxu0
      %v1092 = vadd.f32 %v870, %v1091
      %v1093 = vpop.f32.mrb[0].mxu0
      %1094 = vmatprep.mubr.f32.mxu0 0.0
      %1095 = vmatmul.mubr.f32.gmra.mrb[0].mxu0 %v950
      %v1096 = vpop.f32.mrb[0].mxu0
      %v1097 = vadd.f32 %v870, %v1096
      %v1098 = vpop.f32.mrb[0].mxu0
      %1099 = vdwg.mxu0
      %v1100 = vmax.f32 %v1022, 0.0
      %v1101 = vmax.f32 %v1027, 0.0
      %v1102 = vmax.f32 %v1032, 0.0
      %v1103 = vmax.f32 %v1037, 0.0
      %v1104 = vmax.f32 %v1042, 0.0
      %v1105 = vmax.f32 %v1047, 0.0
      %v1106 = vmax.f32 %v1052, 0.0
      %v1107 = vmax.f32 %v1057, 0.0
      %v1108 = vmax.f32 %v1062, 0.0
      %v1109 = vmax.f32 %v1067, 0.0
      %v1110 = vmax.f32 %v1072, 0.0
      %v1111 = vmax.f32 %v1077, 0.0
      %v1112 = vmax.f32 %v1082, 0.0
      %v1113 = vmax.f32 %v1087, 0.0
      %v1114 = vmax.f32 %v1092, 0.0
      %v1115 = vmax.f32 %v1097, 0.0
      %vm1116 = vcmask 80896
      %1117 = vst.msk [vmem:[%s288] sm:$0xff] %vm1116, %v744
      %1118 = vst.msk [vmem:[%s288 + $0x8] sm:$0xff] %vm1116, %v749
      %1119 = vst.msk [vmem:[%s288 + $0x10] sm:$0xff] %vm1116, %v754
      %1120 = vst.msk [vmem:[%s288 + $0x18] sm:$0xff] %vm1116, %v759
      %1121 = vst.msk [vmem:[%s288 + $0x20] sm:$0xff] %vm1116, %v764
      %1122 = vst.msk [vmem:[%s288 + $0x28] sm:$0xff] %vm1116, %v769
      %1123 = vst.msk [vmem:[%s288 + $0x30] sm:$0xff] %vm1116, %v774
      %1124 = vst.msk [vmem:[%s288 + $0x38] sm:$0xff] %vm1116, %v779
      %1125 = vst.msk [vmem:[%s288 + $0x40] sm:$0xff] %vm1116, %v784
      %1126 = vst.msk [vmem:[%s288 + $0x48] sm:$0xff] %vm1116, %v789
      %1127 = vst.msk [vmem:[%s288 + $0x50] sm:$0xff] %vm1116, %v794
      %1128 = vst.msk [vmem:[%s288 + $0x58] sm:$0xff] %vm1116, %v799
      %1129 = vst.msk [vmem:[%s288 + $0x60] sm:$0xff] %vm1116, %v804
      %1130 = vst.msk [vmem:[%s288 + $0x68] sm:$0xff] %vm1116, %v809
      %1131 = vst.msk [vmem:[%s288 + $0x70] sm:$0xff] %vm1116, %v814
      %1132 = vst.msk [vmem:[%s288 + $0x78] sm:$0xff] %vm1116, %v819
      %1149 = vrot.lane.b32.xlu0 %v1100, 10
      %v1150 = vpop.permute.xlu0 %1149
      %1151 = vrot.lane.b32.xlu0 %v1101, 10
      %v1152 = vpop.permute.xlu0 %1151
      %1153 = vrot.lane.b32.xlu0 %v1102, 10
      %v1154 = vpop.permute.xlu0 %1153
      %1155 = vrot.lane.b32.xlu0 %v1103, 10
      %v1156 = vpop.permute.xlu0 %1155
      %1157 = vrot.lane.b32.xlu0 %v1104, 10
      %v1158 = vpop.permute.xlu0 %1157
      %1159 = vrot.lane.b32.xlu0 %v1105, 10
      %v1160 = vpop.permute.xlu0 %1159
      %1161 = vrot.lane.b32.xlu0 %v1106, 10
      %v1162 = vpop.permute.xlu0 %1161
      %1163 = vrot.lane.b32.xlu0 %v1107, 10
      %v1164 = vpop.permute.xlu0 %1163
      %1165 = vrot.lane.b32.xlu0 %v1108, 10
      %v1166 = vpop.permute.xlu0 %1165
      %1167 = vrot.lane.b32.xlu0 %v1109, 10
      %v1168 = vpop.permute.xlu0 %1167
      %1169 = vrot.lane.b32.xlu0 %v1110, 10
      %v1170 = vpop.permute.xlu0 %1169
      %1171 = vrot.lane.b32.xlu0 %v1111, 10
      %v1172 = vpop.permute.xlu0 %1171
      %1173 = vrot.lane.b32.xlu0 %v1112, 10
      %v1174 = vpop.permute.xlu0 %1173
      %1175 = vrot.lane.b32.xlu0 %v1113, 10
      %v1176 = vpop.permute.xlu0 %1175
      %1177 = vrot.lane.b32.xlu0 %v1114, 10
      %v1178 = vpop.permute.xlu0 %1177
      %1179 = vrot.lane.b32.xlu0 %v1115, 10
      %v1180 = vpop.permute.xlu0 %1179
      %vm1197 = vcmask 179280
      %1198 = vst.msk [vmem:[%s288] sm:$0xff] %vm1197, %v1150
      %1199 = vst.msk [vmem:[%s288 + $0x8] sm:$0xff] %vm1197, %v1152
      %1200 = vst.msk [vmem:[%s288 + $0x10] sm:$0xff] %vm1197, %v1154
      %1201 = vst.msk [vmem:[%s288 + $0x18] sm:$0xff] %vm1197, %v1156
      %1202 = vst.msk [vmem:[%s288 + $0x20] sm:$0xff] %vm1197, %v1158
      %1203 = vst.msk [vmem:[%s288 + $0x28] sm:$0xff] %vm1197, %v1160
      %1204 = vst.msk [vmem:[%s288 + $0x30] sm:$0xff] %vm1197, %v1162
      %1205 = vst.msk [vmem:[%s288 + $0x38] sm:$0xff] %vm1197, %v1164
      %1206 = vst.msk [vmem:[%s288 + $0x40] sm:$0xff] %vm1197, %v1166
      %1207 = vst.msk [vmem:[%s288 + $0x48] sm:$0xff] %vm1197, %v1168
      %1208 = vst.msk [vmem:[%s288 + $0x50] sm:$0xff] %vm1197, %v1170
      %1209 = vst.msk [vmem:[%s288 + $0x58] sm:$0xff] %vm1197, %v1172
      %1210 = vst.msk [vmem:[%s288 + $0x60] sm:$0xff] %vm1197, %v1174
      %1211 = vst.msk [vmem:[%s288 + $0x68] sm:$0xff] %vm1197, %v1176
      %1212 = vst.msk [vmem:[%s288 + $0x70] sm:$0xff] %vm1197, %v1178
      %1213 = vst.msk [vmem:[%s288 + $0x78] sm:$0xff] %vm1197, %v1180
      %1214 = vrot.lane.b32.xlu0 %v607, 22
      %v1215 = vpop.permute.xlu0 %1214
      %1216 = vrot.lane.b32.xlu0 %v608, 22
      %v1217 = vpop.permute.xlu0 %1216
      %1218 = vrot.lane.b32.xlu0 %v609, 22
      %v1219 = vpop.permute.xlu0 %1218
      %1220 = vrot.lane.b32.xlu0 %v610, 22
      %v1221 = vpop.permute.xlu0 %1220
      %1222 = vrot.lane.b32.xlu0 %v611, 22
      %v1223 = vpop.permute.xlu0 %1222
      %1224 = vrot.lane.b32.xlu0 %v612, 22
      %v1225 = vpop.permute.xlu0 %1224
      %1226 = vrot.lane.b32.xlu0 %v613, 22
      %v1227 = vpop.permute.xlu0 %1226
      %1228 = vrot.lane.b32.xlu0 %v614, 22
      %v1229 = vpop.permute.xlu0 %1228
      %1230 = vrot.lane.b32.xlu0 %v615, 22
      %v1231 = vpop.permute.xlu0 %1230
      %1232 = vrot.lane.b32.xlu0 %v616, 22
      %v1233 = vpop.permute.xlu0 %1232
      %1234 = vrot.lane.b32.xlu0 %v617, 22
      %v1235 = vpop.permute.xlu0 %1234
      %1236 = vrot.lane.b32.xlu0 %v618, 22
      %v1237 = vpop.permute.xlu0 %1236
      %1238 = vrot.lane.b32.xlu0 %v619, 22
      %v1239 = vpop.permute.xlu0 %1238
      %1240 = vrot.lane.b32.xlu0 %v620, 22
      %v1241 = vpop.permute.xlu0 %1240
      %1242 = vrot.lane.b32.xlu0 %v621, 22
      %v1243 = vpop.permute.xlu0 %1242
      %1244 = vrot.lane.b32.xlu0 %v622, 22
      %v1245 = vpop.permute.xlu0 %1244
      %vm1262 = vcmask 294064
      %1263 = vst.msk [vmem:[%s288] sm:$0xff] %vm1262, %v1215
      %1264 = vst.msk [vmem:[%s288 + $0x8] sm:$0xff] %vm1262, %v1217
      %1265 = vst.msk [vmem:[%s288 + $0x10] sm:$0xff] %vm1262, %v1219
      %1266 = vst.msk [vmem:[%s288 + $0x18] sm:$0xff] %vm1262, %v1221
      %1267 = vst.msk [vmem:[%s288 + $0x20] sm:$0xff] %vm1262, %v1223
      %1268 = vst.msk [vmem:[%s288 + $0x28] sm:$0xff] %vm1262, %v1225
      %1269 = vst.msk [vmem:[%s288 + $0x30] sm:$0xff] %vm1262, %v1227
      %1270 = vst.msk [vmem:[%s288 + $0x38] sm:$0xff] %vm1262, %v1229
      %1271 = vst.msk [vmem:[%s288 + $0x40] sm:$0xff] %vm1262, %v1231
      %1272 = vst.msk [vmem:[%s288 + $0x48] sm:$0xff] %vm1262, %v1233
      %1273 = vst.msk [vmem:[%s288 + $0x50] sm:$0xff] %vm1262, %v1235
      %1274 = vst.msk [vmem:[%s288 + $0x58] sm:$0xff] %vm1262, %v1237
      %1275 = vst.msk [vmem:[%s288 + $0x60] sm:$0xff] %vm1262, %v1239
      %1276 = vst.msk [vmem:[%s288 + $0x68] sm:$0xff] %vm1262, %v1241
      %1277 = vst.msk [vmem:[%s288 + $0x70] sm:$0xff] %vm1262, %v1243
      %1278 = vst.msk [vmem:[%s288 + $0x78] sm:$0xff] %vm1262, %v1245
      %s1279 = smul.u32 16, %s19
      %p1280 = scmp.lt.s32.totalorder %s1279, 79
      %s1281 = scalar_select %p1280, %s1279, 79
      %s1282 = smul.addr %s1281, 8
      %s1283 = scalar_lea.vmem %s6, %s1282
      %s1284 = smul.u32 16, %s19
      %p1285 = scmp.lt.s32.totalorder %s1284, 79
      %s1286 = scalar_select %p1285, %s1284, 79
      %s1287 = smul.addr %s1286, 8
      %s1288 = scalar_lea.vmem %s7, %s1287
      // Predicated region
      $region45: #{tpu_custom_call.1} parent=43 // pred_check
        %p1289 = pneg %p168
      $region46: #{tpu_custom_call.1} parent=43 // pred_check_branch
        %1291 = sbr.rel (%p1289) target = $region48
      $region47: #{tpu_custom_call.1} parent=43 // pred_region
        %s1292 = smul.u32 16, %s19
      $region48: #{tpu_custom_call.1} parent=43 // pred_fallthru
        _
      // Predicated region
      $region49: #{tpu_custom_call.1} parent=43 // pred_check
        %p1293 = pneg %p194
      $region50: #{tpu_custom_call.1} parent=43 // pred_check_branch
        %1295 = sbr.rel (%p1293) target = $region52
      $region51: #{tpu_custom_call.1} parent=43 // pred_region
        %s1296 = smul.u32 16, %s19
      $region52: #{tpu_custom_call.1} parent=43 // pred_fallthru
        _
    $region44: #{tpu_custom_call.1} parent=5 // pred_fallthru
      _
    %p1297 = scmp.le.s32.totalorder 2, %s14
    // Predicated region
    $region53: #{tpu_custom_call.1} parent=5 // pred_check
      %p1298 = pneg %p1297
    $region54: #{tpu_custom_call.1} parent=5 // pred_check_branch
      %1300 = sbr.rel (%p1298) target = $region56
    $region55: #{tpu_custom_call.1} parent=5 // pred_region
      %s1301 = ssub.s32 %s14, 2
      // Predicated region
      $region57: #{tpu_custom_call.1} parent=55 // pred_check
        %p1302 = pneg %p174
      $region58: #{tpu_custom_call.1} parent=55 // pred_check_branch
        %1304 = sbr.rel (%p1302) target = $region60
      $region59: #{tpu_custom_call.1} parent=55 // pred_region
        %s1305 = smul.u32 16, %s20
        %p1306 = scmp.lt.s32.totalorder %s1305, 79
        %s1307 = scalar_select %p1306, %s1305, 79
        %s1308 = smul.addr %s1307, 8
        %s1309 = scalar_lea.vmem %s6, %s1308
      $region60: #{tpu_custom_call.1} parent=55 // pred_fallthru
        _
      // Predicated region
      $region61: #{tpu_custom_call.1} parent=55 // pred_check
        %p1310 = pneg %p200
      $region62: #{tpu_custom_call.1} parent=55 // pred_check_branch
        %1312 = sbr.rel (%p1310) target = $region64
      $region63: #{tpu_custom_call.1} parent=55 // pred_region
        %s1313 = smul.u32 16, %s20
        %p1314 = scmp.lt.s32.totalorder %s1313, 79
        %s1315 = scalar_select %p1314, %s1313, 79
        %s1316 = smul.addr %s1315, 8
        %s1317 = scalar_lea.vmem %s7, %s1316
      $region64: #{tpu_custom_call.1} parent=55 // pred_fallthru
        _
    $region56: #{tpu_custom_call.1} parent=5 // pred_fallthru
      _
  $region6: #{tpu_custom_call.1} parent=0 // loop_footer
    %s18 = sadd.s32 1, %s14
  $region7: #{tpu_custom_call.1} parent=0 // loop_footer_branch
    %13 = sbr.rel target = $region3
  $region8: #{tpu_custom_call.1} parent=0 // loop_exit
    _

</llo_original>
